<compile_context>
chip_gen: v7x
topology: tpu7x:2x2x1
jax: 0.10.0
libtpu: 0.0.40
codegen_flags: <defaults>
</compile_context>

<pallas_src>
import functools
import math

import jax
import jax.numpy as jnp
from jax import lax
from jax.experimental import pallas as pl
from jax.experimental.pallas import tpu as pltpu


# ------------------------------- configuration ----------------------------- #
HIDDEN_DIM = 32
ATTN_HEADS = 4
NORMALIZE_KERNEL = True     # config.normalize_kernel
# config.mask_type == 'causal' (the non-causal branch raises in the reference)


# ------------------------------- Pallas kernel ------------------------------ #
def _phi(u, gamma, beta, normalize):
    # Kernel.forward: optional per-token normalize (unbiased std, eps added to
    # std), then (gamma * u + beta) ** 2.
    if normalize:
        c = u.shape[-1]
        mean = jnp.mean(u, axis=-1, keepdims=True)
        d = u - mean
        var = jnp.sum(d * d, axis=-1, keepdims=True) / (c - 1)  # torch std(): ddof=1
        u = d / (jnp.sqrt(var) + 1e-6)
    t = gamma * u + beta
    return t * t


def _rebased_kernel(x_ref, wqkv_ref, bqkv_ref, gq_ref, betaq_ref, gk_ref, betak_ref,
                    wproj_ref, bproj_ref, o_ref, *, heads, normalize_kernel):
    # One batch element per grid step; whole layer stays VMEM-resident.
    T, C = x_ref.shape[1], x_ref.shape[2]
    hd = C // heads
    x = x_ref[0]                                    # (T, C)

    w = wqkv_ref[...]                               # (3C, C)  torch (out, in) layout
    b = bqkv_ref[...]                               # (3, C)   [b_q; b_k; b_v]

    def linear_t(a, wt, bias):                      # a @ wt.T + bias (nn.Linear)
        acc = lax.dot_general(a, wt, (((1,), (1,)), ((), ())),
                              preferred_element_type=jnp.float32)
        return acc + bias

    q = linear_t(x, w[0 * C:1 * C], b[0:1])         # (T, C)
    k = linear_t(x, w[1 * C:2 * C], b[1:2])         # (T, C)
    v = linear_t(x, w[2 * C:3 * C], b[2:3])         # (T, C)

    kerq = _phi(q, gq_ref[...], betaq_ref[...], normalize_kernel)
    kerk = _phi(k, gk_ref[...], betak_ref[...], normalize_kernel)

    # Causal linear attention.  Reference computes
    #   kv[t] = cumsum_t( kerk[t] (x) v[t] );  out[t] = kerq[t] . kv[t]
    #   Z[t]  = 1 / (kerq[t] . cumsum_t(kerk)[t] + 1e-6)
    # which is exactly the causally-masked quadratic form below.
    row = lax.broadcasted_iota(jnp.int32, (T, T), 0)     # query index
    col = lax.broadcasted_iota(jnp.int32, (T, T), 1)     # key index
    causal = col <= row

    lane = lax.broadcasted_iota(jnp.int32, (1, C), 1)    # channel index

    out = jnp.zeros((T, C), jnp.float32)
    for h in range(heads):                               # static unroll; no per-head grid
        head_mask = (lane >= h * hd) & (lane < (h + 1) * hd)          # (1, C)
        qh = jnp.where(head_mask, kerq, 0.0)                          # zero off-head lanes
        vh = jnp.where(head_mask, v, 0.0)
        # s[t, u] = kerq_h[t] . kerk_h[u]  (masked q lanes == head slicing)
        s = lax.dot_general(qh, kerk, (((1,), (1,)), ((), ())),
                            preferred_element_type=jnp.float32)       # (T, T)
        s = jnp.where(causal, s, 0.0)
        z = 1.0 / (jnp.sum(s, axis=-1, keepdims=True) + 1e-6)         # (T, 1)
        # s @ vh is zero outside head-h channels, so the sum concatenates heads.
        out = out + z * jnp.dot(s, vh, preferred_element_type=jnp.float32)

    y = linear_t(out, wproj_ref[...], bproj_ref[...])                 # (T, C)
    o_ref[0] = y.astype(o_ref.dtype)


# --------------------------------- wrapper ---------------------------------- #
def rebased_attention(x, params):
    """x: (B, T, C) float32 -> (B, T, C) float32 (ReBasedAttention.forward)."""
    B, T, C = x.shape
    kernel = functools.partial(_rebased_kernel, heads=ATTN_HEADS,
                               normalize_kernel=NORMALIZE_KERNEL)

    def rep(shape):   # full-array block, same block every grid step (stays resident)
        nd = len(shape)
        return pl.BlockSpec(shape, lambda i: (0,) * nd)

    return pl.pallas_call(
        kernel,
        out_shape=jax.ShapeDtypeStruct((B, T, C), x.dtype),
        grid=(B,),
        in_specs=[
            pl.BlockSpec((1, T, C), lambda i: (i, 0, 0)),   # x, one batch per step
            rep((3 * C, C)),                                # attn weight (torch layout)
            rep((3, C)),                                    # attn bias as (3, C)
            rep((1, C)), rep((1, C)),                       # phiq gamma / beta
            rep((1, C)), rep((1, C)),                       # phik gamma / beta
            rep((C, C)),                                    # proj weight (torch layout)
            rep((1, C)),                                    # proj bias
        ],
        out_specs=pl.BlockSpec((1, T, C), lambda i: (i, 0, 0)),
        compiler_params=pltpu.CompilerParams(
            dimension_semantics=("parallel",)),             # v7x: batch across 2 TCs
    )(x,
      params["attn_w"], params["attn_b"].reshape(3, C),
      params["phiq_gamma"].reshape(1, C), params["phiq_beta"].reshape(1, C),
      params["phik_gamma"].reshape(1, C), params["phik_beta"].reshape(1, C),
      params["linear_w"], params["linear_b"].reshape(1, C))


# -------------------------- pure-JAX reference (spec) ------------------------ #
def rebased_attention_ref(x, params):
    B, T, C = x.shape
    H = ATTN_HEADS
    hd = C // H
    hp = lax.Precision.HIGHEST
    qkv = jnp.dot(x, params["attn_w"].T, precision=hp) + params["attn_b"]
    q, k, v = jnp.split(qkv, 3, axis=-1)

    def phi(u, g, b):
        m = jnp.mean(u, axis=-1, keepdims=True)
        s = jnp.std(u, axis=-1, ddof=1, keepdims=True)
        un = (u - m) / (s + 1e-6)
        return jnp.square(g * un + b)

    kerq = phi(q, params["phiq_gamma"], params["phiq_beta"])
    kerk = phi(k, params["phik_gamma"], params["phik_beta"])

    def heads(t):
        return t.reshape(B, T, H, hd).transpose(0, 2, 1, 3)

    kerq, kerk, v = heads(kerq), heads(kerk), heads(v)
    kv = jnp.cumsum(jnp.einsum('bhtf,bhtg->bhtfg', kerk, v, precision=hp), axis=2)
    out = jnp.einsum('bhtf,bhtfg->bhtg', kerq, kv, precision=hp)
    Z = 1.0 / (jnp.einsum('bhtf,bhtf->bht', kerq, jnp.cumsum(kerk, axis=2),
                          precision=hp) + 1e-6)
    out = out * Z[..., None]
    out = out.transpose(0, 2, 1, 3).reshape(B, T, C)
    return jnp.dot(out, params["linear_w"].T, precision=hp) + params["linear_b"]


# --------------------------- parameter initialization ------------------------ #
def _linear_init(key, out_f, in_f):
    kw, kb = jax.random.split(key)
    bound = 1.0 / math.sqrt(in_f)
    w = jax.random.uniform(kw, (out_f, in_f), jnp.float32, -bound, bound)
    b = jax.random.uniform(kb, (out_f,), jnp.float32, -bound, bound)
    return w, b


def init_params(key):
    k = jax.random.split(key, 6)
    p = {}
    p["attn_w"], p["attn_b"] = _linear_init(k[0], 3 * HIDDEN_DIM, HIDDEN_DIM)
    p["linear_w"], p["linear_b"] = _linear_init(k[1], HIDDEN_DIM, HIDDEN_DIM)
    p["phiq_gamma"] = jax.random.uniform(k[2], (HIDDEN_DIM,), jnp.float32)
    p["phiq_beta"] = jax.random.uniform(k[3], (HIDDEN_DIM,), jnp.float32)
    p["phik_gamma"] = jax.random.uniform(k[4], (HIDDEN_DIM,), jnp.float32)
    p["phik_beta"] = jax.random.uniform(k[5], (HIDDEN_DIM,), jnp.float32)
    return p


# ------------------------------------ main ----------------------------------- #
if __name__ == "__main__":
    key = jax.random.PRNGKey(0)
    pkey, xkey = jax.random.split(key)
    params = init_params(pkey)

    B, T, C = 2, 8, HIDDEN_DIM
    x = jax.random.normal(xkey, (B, T, C), jnp.float32)

    fwd = jax.jit(rebased_attention)
    out = jax.block_until_ready(fwd(x, params))

    ref = jax.block_until_ready(rebased_attention_ref(x, params))

    assert out.shape == (B, T, C)
    assert bool(jnp.all(jnp.isfinite(out)))
    # Loose bound: catches structural bugs (mask / head / normalize errors give
    # O(0.1+) deviations) while tolerating MXU default-pass precision differences.
    max_err = float(jnp.max(jnp.abs(out - ref)))
    assert max_err < 1e-1, f"mismatch vs reference: max abs err {max_err}"
    print("KERNEL_OK")
</pallas_src>

<mosaic_0001>
module attributes {stable_mosaic.version = 11 : i64} {
  func.func @_rebased_kernel(%arg0: i32, %arg1: memref<1x8x32xf32, #tpu.memory_space<vmem>>, %arg2: memref<96x32xf32, #tpu.memory_space<vmem>>, %arg3: memref<3x32xf32, #tpu.memory_space<vmem>>, %arg4: memref<1x32xf32, #tpu.memory_space<vmem>>, %arg5: memref<1x32xf32, #tpu.memory_space<vmem>>, %arg6: memref<1x32xf32, #tpu.memory_space<vmem>>, %arg7: memref<1x32xf32, #tpu.memory_space<vmem>>, %arg8: memref<32x32xf32, #tpu.memory_space<vmem>>, %arg9: memref<1x32xf32, #tpu.memory_space<vmem>>, %arg10: memref<1x8x32xf32, #tpu.memory_space<vmem>>) attributes {dimension_semantics = [#tpu.dimension_semantics<parallel>], iteration_bounds = array<i64: 2>, scalar_prefetch = 0 : i64, scratch_operands = 0 : i64, tpu.core_type = #tpu.core_type<tc>, window_params = [{transform_indices = @transform_0, window_bounds = array<i64: 1, 8, 32>}, {pipeline_mode = #tpu.pipeline_mode<synchronous>, transform_indices = @transform_1, window_bounds = array<i64: 96, 32>}, {pipeline_mode = #tpu.pipeline_mode<synchronous>, transform_indices = @transform_2, window_bounds = array<i64: 3, 32>}, {pipeline_mode = #tpu.pipeline_mode<synchronous>, transform_indices = @transform_3, window_bounds = array<i64: 1, 32>}, {pipeline_mode = #tpu.pipeline_mode<synchronous>, transform_indices = @transform_4, window_bounds = array<i64: 1, 32>}, {pipeline_mode = #tpu.pipeline_mode<synchronous>, transform_indices = @transform_5, window_bounds = array<i64: 1, 32>}, {pipeline_mode = #tpu.pipeline_mode<synchronous>, transform_indices = @transform_6, window_bounds = array<i64: 1, 32>}, {pipeline_mode = #tpu.pipeline_mode<synchronous>, transform_indices = @transform_7, window_bounds = array<i64: 32, 32>}, {pipeline_mode = #tpu.pipeline_mode<synchronous>, transform_indices = @transform_8, window_bounds = array<i64: 1, 32>}, {transform_indices = @transform_9, window_bounds = array<i64: 1, 8, 32>}]} {
    %c0 = arith.constant 0 : index
    %c0_0 = arith.constant 0 : index
    %c0_1 = arith.constant 0 : index
    %0 = vector.load %arg1[%c0, %c0_0, %c0_1] : memref<1x8x32xf32, #tpu.memory_space<vmem>>, vector<1x8x32xf32>
    %1 = vector.shape_cast %0 : vector<1x8x32xf32> to vector<8x32xf32>
    %c0_2 = arith.constant 0 : index
    %c0_3 = arith.constant 0 : index
    %2 = vector.load %arg2[%c0_2, %c0_3] : memref<96x32xf32, #tpu.memory_space<vmem>>, vector<96x32xf32>
    %c0_4 = arith.constant 0 : index
    %c0_5 = arith.constant 0 : index
    %3 = vector.load %arg3[%c0_4, %c0_5] : memref<3x32xf32, #tpu.memory_space<vmem>>, vector<3x32xf32>
    %4 = vector.extract_strided_slice %2 {offsets = [0, 0], sizes = [32, 32], strides = [1, 1]} : vector<96x32xf32> to vector<32x32xf32>
    %5 = vector.extract_strided_slice %3 {offsets = [0, 0], sizes = [1, 32], strides = [1, 1]} : vector<3x32xf32> to vector<1x32xf32>
    %cst = arith.constant dense<0.000000e+00> : vector<8x32xf32>
    %6 = tpu.matmul %1, %4, %cst {dimension_numbers = #tpu.dot_dimension_numbers<[1], [1], [0], [0], [0, 0, 1, 0], [], []>} : vector<8x32xf32>, vector<32x32xf32>, vector<8x32xf32> -> vector<8x32xf32>
    %7 = vector.broadcast %5 : vector<1x32xf32> to vector<8x32xf32>
    %8 = arith.addf %6, %7 : vector<8x32xf32>
    %9 = vector.extract_strided_slice %2 {offsets = [32, 0], sizes = [32, 32], strides = [1, 1]} : vector<96x32xf32> to vector<32x32xf32>
    %10 = vector.extract_strided_slice %3 {offsets = [1, 0], sizes = [1, 32], strides = [1, 1]} : vector<3x32xf32> to vector<1x32xf32>
    %cst_6 = arith.constant dense<0.000000e+00> : vector<8x32xf32>
    %11 = tpu.matmul %1, %9, %cst_6 {dimension_numbers = #tpu.dot_dimension_numbers<[1], [1], [0], [0], [0, 0, 1, 0], [], []>} : vector<8x32xf32>, vector<32x32xf32>, vector<8x32xf32> -> vector<8x32xf32>
    %12 = vector.broadcast %10 : vector<1x32xf32> to vector<8x32xf32>
    %13 = arith.addf %11, %12 : vector<8x32xf32>
    %14 = vector.extract_strided_slice %2 {offsets = [64, 0], sizes = [32, 32], strides = [1, 1]} : vector<96x32xf32> to vector<32x32xf32>
    %15 = vector.extract_strided_slice %3 {offsets = [2, 0], sizes = [1, 32], strides = [1, 1]} : vector<3x32xf32> to vector<1x32xf32>
    %cst_7 = arith.constant dense<0.000000e+00> : vector<8x32xf32>
    %16 = tpu.matmul %1, %14, %cst_7 {dimension_numbers = #tpu.dot_dimension_numbers<[1], [1], [0], [0], [0, 0, 1, 0], [], []>} : vector<8x32xf32>, vector<32x32xf32>, vector<8x32xf32> -> vector<8x32xf32>
    %17 = vector.broadcast %15 : vector<1x32xf32> to vector<8x32xf32>
    %18 = arith.addf %16, %17 : vector<8x32xf32>
    %c0_8 = arith.constant 0 : index
    %c0_9 = arith.constant 0 : index
    %19 = vector.load %arg4[%c0_8, %c0_9] : memref<1x32xf32, #tpu.memory_space<vmem>>, vector<1x32xf32>
    %c0_10 = arith.constant 0 : index
    %c0_11 = arith.constant 0 : index
    %20 = vector.load %arg5[%c0_10, %c0_11] : memref<1x32xf32, #tpu.memory_space<vmem>>, vector<1x32xf32>
    %cst_12 = arith.constant dense<0.000000e+00> : vector<8xf32>
    %21 = vector.multi_reduction <add>, %8, %cst_12 [1] : vector<8x32xf32> to vector<8xf32>
    %22 = vector.shape_cast %21 : vector<8xf32> to vector<8x1xf32>
    %cst_13 = arith.constant 3.200000e+01 : f32
    %23 = vector.broadcast %cst_13 : f32 to vector<8x1xf32>
    %24 = arith.divf %22, %23 : vector<8x1xf32>
    %25 = vector.broadcast %24 : vector<8x1xf32> to vector<8x32xf32>
    %26 = arith.subf %8, %25 : vector<8x32xf32>
    %27 = arith.mulf %26, %26 : vector<8x32xf32>
    %cst_14 = arith.constant dense<0.000000e+00> : vector<8xf32>
    %28 = vector.multi_reduction <add>, %27, %cst_14 [1] : vector<8x32xf32> to vector<8xf32>
    %29 = vector.shape_cast %28 : vector<8xf32> to vector<8x1xf32>
    %cst_15 = arith.constant 3.100000e+01 : f32
    %30 = vector.broadcast %cst_15 : f32 to vector<8x1xf32>
    %31 = arith.divf %29, %30 : vector<8x1xf32>
    %32 = math.sqrt %31 : vector<8x1xf32>
    %cst_16 = arith.constant 9.99999997E-7 : f32
    %33 = vector.broadcast %cst_16 : f32 to vector<8x1xf32>
    %34 = arith.addf %32, %33 : vector<8x1xf32>
    %35 = vector.broadcast %34 : vector<8x1xf32> to vector<8x32xf32>
    %36 = arith.divf %26, %35 : vector<8x32xf32>
    %37 = vector.broadcast %19 : vector<1x32xf32> to vector<8x32xf32>
    %38 = arith.mulf %37, %36 : vector<8x32xf32>
    %39 = vector.broadcast %20 : vector<1x32xf32> to vector<8x32xf32>
    %40 = arith.addf %38, %39 : vector<8x32xf32>
    %41 = arith.mulf %40, %40 : vector<8x32xf32>
    %c0_17 = arith.constant 0 : index
    %c0_18 = arith.constant 0 : index
    %42 = vector.load %arg6[%c0_17, %c0_18] : memref<1x32xf32, #tpu.memory_space<vmem>>, vector<1x32xf32>
    %c0_19 = arith.constant 0 : index
    %c0_20 = arith.constant 0 : index
    %43 = vector.load %arg7[%c0_19, %c0_20] : memref<1x32xf32, #tpu.memory_space<vmem>>, vector<1x32xf32>
    %cst_21 = arith.constant dense<0.000000e+00> : vector<8xf32>
    %44 = vector.multi_reduction <add>, %13, %cst_21 [1] : vector<8x32xf32> to vector<8xf32>
    %45 = vector.shape_cast %44 : vector<8xf32> to vector<8x1xf32>
    %cst_22 = arith.constant 3.200000e+01 : f32
    %46 = vector.broadcast %cst_22 : f32 to vector<8x1xf32>
    %47 = arith.divf %45, %46 : vector<8x1xf32>
    %48 = vector.broadcast %47 : vector<8x1xf32> to vector<8x32xf32>
    %49 = arith.subf %13, %48 : vector<8x32xf32>
    %50 = arith.mulf %49, %49 : vector<8x32xf32>
    %cst_23 = arith.constant dense<0.000000e+00> : vector<8xf32>
    %51 = vector.multi_reduction <add>, %50, %cst_23 [1] : vector<8x32xf32> to vector<8xf32>
    %52 = vector.shape_cast %51 : vector<8xf32> to vector<8x1xf32>
    %cst_24 = arith.constant 3.100000e+01 : f32
    %53 = vector.broadcast %cst_24 : f32 to vector<8x1xf32>
    %54 = arith.divf %52, %53 : vector<8x1xf32>
    %55 = math.sqrt %54 : vector<8x1xf32>
    %cst_25 = arith.constant 9.99999997E-7 : f32
    %56 = vector.broadcast %cst_25 : f32 to vector<8x1xf32>
    %57 = arith.addf %55, %56 : vector<8x1xf32>
    %58 = vector.broadcast %57 : vector<8x1xf32> to vector<8x32xf32>
    %59 = arith.divf %49, %58 : vector<8x32xf32>
    %60 = vector.broadcast %42 : vector<1x32xf32> to vector<8x32xf32>
    %61 = arith.mulf %60, %59 : vector<8x32xf32>
    %62 = vector.broadcast %43 : vector<1x32xf32> to vector<8x32xf32>
    %63 = arith.addf %61, %62 : vector<8x32xf32>
    %64 = arith.mulf %63, %63 : vector<8x32xf32>
    %65 = tpu.iota {dimensions = array<i32: 0>} : vector<8x8xi32>
    %66 = tpu.iota {dimensions = array<i32: 1>} : vector<8x8xi32>
    %67 = arith.cmpi sle, %66, %65 : vector<8x8xi32>
    %68 = tpu.iota {dimensions = array<i32: 1>} : vector<1x32xi32>
    %cst_26 = arith.constant 0.000000e+00 : f32
    %69 = vector.broadcast %cst_26 : f32 to vector<8x32xf32>
    %c0_i32 = arith.constant 0 : i32
    %70 = vector.broadcast %c0_i32 : i32 to vector<1x32xi32>
    %71 = arith.cmpi sge, %68, %70 : vector<1x32xi32>
    %c8_i32 = arith.constant 8 : i32
    %72 = vector.broadcast %c8_i32 : i32 to vector<1x32xi32>
    %73 = arith.cmpi slt, %68, %72 : vector<1x32xi32>
    %74 = arith.andi %71, %73 : vector<1x32xi1>
    %cst_27 = arith.constant 0.000000e+00 : f32
    %75 = vector.shape_cast %74 : vector<1x32xi1> to vector<1x32xi1>
    %76 = vector.broadcast %75 : vector<1x32xi1> to vector<8x32xi1>
    %77 = vector.broadcast %cst_27 : f32 to vector<8x32xf32>
    %78 = arith.select %76, %41, %77 : vector<8x32xi1>, vector<8x32xf32>
    %cst_28 = arith.constant 0.000000e+00 : f32
    %79 = vector.shape_cast %74 : vector<1x32xi1> to vector<1x32xi1>
    %80 = vector.broadcast %79 : vector<1x32xi1> to vector<8x32xi1>
    %81 = vector.broadcast %cst_28 : f32 to vector<8x32xf32>
    %82 = arith.select %80, %18, %81 : vector<8x32xi1>, vector<8x32xf32>
    %cst_29 = arith.constant dense<0.000000e+00> : vector<8x8xf32>
    %83 = tpu.matmul %78, %64, %cst_29 {dimension_numbers = #tpu.dot_dimension_numbers<[1], [1], [0], [0], [0, 0, 1, 0], [], []>} : vector<8x32xf32>, vector<8x32xf32>, vector<8x8xf32> -> vector<8x8xf32>
    %cst_30 = arith.constant 0.000000e+00 : f32
    %84 = vector.broadcast %cst_30 : f32 to vector<8x8xf32>
    %85 = arith.select %67, %83, %84 : vector<8x8xi1>, vector<8x8xf32>
    %cst_31 = arith.constant dense<0.000000e+00> : vector<8xf32>
    %86 = vector.multi_reduction <add>, %85, %cst_31 [1] : vector<8x8xf32> to vector<8xf32>
    %87 = vector.shape_cast %86 : vector<8xf32> to vector<8x1xf32>
    %cst_32 = arith.constant 9.99999997E-7 : f32
    %88 = vector.broadcast %cst_32 : f32 to vector<8x1xf32>
    %89 = arith.addf %87, %88 : vector<8x1xf32>
    %cst_33 = arith.constant 1.000000e+00 : f32
    %90 = vector.broadcast %cst_33 : f32 to vector<8x1xf32>
    %91 = arith.divf %90, %89 : vector<8x1xf32>
    %cst_34 = arith.constant dense<0.000000e+00> : vector<8x32xf32>
    %92 = tpu.matmul %85, %82, %cst_34 {dimension_numbers = #tpu.dot_dimension_numbers<[1], [0], [0], [1], [0, 0, 1, 1], [], []>} : vector<8x8xf32>, vector<8x32xf32>, vector<8x32xf32> -> vector<8x32xf32>
    %93 = vector.broadcast %91 : vector<8x1xf32> to vector<8x32xf32>
    %94 = arith.mulf %93, %92 : vector<8x32xf32>
    %95 = arith.addf %69, %94 : vector<8x32xf32>
    %c8_i32_35 = arith.constant 8 : i32
    %96 = vector.broadcast %c8_i32_35 : i32 to vector<1x32xi32>
    %97 = arith.cmpi sge, %68, %96 : vector<1x32xi32>
    %c16_i32 = arith.constant 16 : i32
    %98 = vector.broadcast %c16_i32 : i32 to vector<1x32xi32>
    %99 = arith.cmpi slt, %68, %98 : vector<1x32xi32>
    %100 = arith.andi %97, %99 : vector<1x32xi1>
    %cst_36 = arith.constant 0.000000e+00 : f32
    %101 = vector.shape_cast %100 : vector<1x32xi1> to vector<1x32xi1>
    %102 = vector.broadcast %101 : vector<1x32xi1> to vector<8x32xi1>
    %103 = vector.broadcast %cst_36 : f32 to vector<8x32xf32>
    %104 = arith.select %102, %41, %103 : vector<8x32xi1>, vector<8x32xf32>
    %cst_37 = arith.constant 0.000000e+00 : f32
    %105 = vector.shape_cast %100 : vector<1x32xi1> to vector<1x32xi1>
    %106 = vector.broadcast %105 : vector<1x32xi1> to vector<8x32xi1>
    %107 = vector.broadcast %cst_37 : f32 to vector<8x32xf32>
    %108 = arith.select %106, %18, %107 : vector<8x32xi1>, vector<8x32xf32>
    %cst_38 = arith.constant dense<0.000000e+00> : vector<8x8xf32>
    %109 = tpu.matmul %104, %64, %cst_38 {dimension_numbers = #tpu.dot_dimension_numbers<[1], [1], [0], [0], [0, 0, 1, 0], [], []>} : vector<8x32xf32>, vector<8x32xf32>, vector<8x8xf32> -> vector<8x8xf32>
    %cst_39 = arith.constant 0.000000e+00 : f32
    %110 = vector.broadcast %cst_39 : f32 to vector<8x8xf32>
    %111 = arith.select %67, %109, %110 : vector<8x8xi1>, vector<8x8xf32>
    %cst_40 = arith.constant dense<0.000000e+00> : vector<8xf32>
    %112 = vector.multi_reduction <add>, %111, %cst_40 [1] : vector<8x8xf32> to vector<8xf32>
    %113 = vector.shape_cast %112 : vector<8xf32> to vector<8x1xf32>
    %cst_41 = arith.constant 9.99999997E-7 : f32
    %114 = vector.broadcast %cst_41 : f32 to vector<8x1xf32>
    %115 = arith.addf %113, %114 : vector<8x1xf32>
    %cst_42 = arith.constant 1.000000e+00 : f32
    %116 = vector.broadcast %cst_42 : f32 to vector<8x1xf32>
    %117 = arith.divf %116, %115 : vector<8x1xf32>
    %cst_43 = arith.constant dense<0.000000e+00> : vector<8x32xf32>
    %118 = tpu.matmul %111, %108, %cst_43 {dimension_numbers = #tpu.dot_dimension_numbers<[1], [0], [0], [1], [0, 0, 1, 1], [], []>} : vector<8x8xf32>, vector<8x32xf32>, vector<8x32xf32> -> vector<8x32xf32>
    %119 = vector.broadcast %117 : vector<8x1xf32> to vector<8x32xf32>
    %120 = arith.mulf %119, %118 : vector<8x32xf32>
    %121 = arith.addf %95, %120 : vector<8x32xf32>
    %c16_i32_44 = arith.constant 16 : i32
    %122 = vector.broadcast %c16_i32_44 : i32 to vector<1x32xi32>
    %123 = arith.cmpi sge, %68, %122 : vector<1x32xi32>
    %c24_i32 = arith.constant 24 : i32
    %124 = vector.broadcast %c24_i32 : i32 to vector<1x32xi32>
    %125 = arith.cmpi slt, %68, %124 : vector<1x32xi32>
    %126 = arith.andi %123, %125 : vector<1x32xi1>
    %cst_45 = arith.constant 0.000000e+00 : f32
    %127 = vector.shape_cast %126 : vector<1x32xi1> to vector<1x32xi1>
    %128 = vector.broadcast %127 : vector<1x32xi1> to vector<8x32xi1>
    %129 = vector.broadcast %cst_45 : f32 to vector<8x32xf32>
    %130 = arith.select %128, %41, %129 : vector<8x32xi1>, vector<8x32xf32>
    %cst_46 = arith.constant 0.000000e+00 : f32
    %131 = vector.shape_cast %126 : vector<1x32xi1> to vector<1x32xi1>
    %132 = vector.broadcast %131 : vector<1x32xi1> to vector<8x32xi1>
    %133 = vector.broadcast %cst_46 : f32 to vector<8x32xf32>
    %134 = arith.select %132, %18, %133 : vector<8x32xi1>, vector<8x32xf32>
    %cst_47 = arith.constant dense<0.000000e+00> : vector<8x8xf32>
    %135 = tpu.matmul %130, %64, %cst_47 {dimension_numbers = #tpu.dot_dimension_numbers<[1], [1], [0], [0], [0, 0, 1, 0], [], []>} : vector<8x32xf32>, vector<8x32xf32>, vector<8x8xf32> -> vector<8x8xf32>
    %cst_48 = arith.constant 0.000000e+00 : f32
    %136 = vector.broadcast %cst_48 : f32 to vector<8x8xf32>
    %137 = arith.select %67, %135, %136 : vector<8x8xi1>, vector<8x8xf32>
    %cst_49 = arith.constant dense<0.000000e+00> : vector<8xf32>
    %138 = vector.multi_reduction <add>, %137, %cst_49 [1] : vector<8x8xf32> to vector<8xf32>
    %139 = vector.shape_cast %138 : vector<8xf32> to vector<8x1xf32>
    %cst_50 = arith.constant 9.99999997E-7 : f32
    %140 = vector.broadcast %cst_50 : f32 to vector<8x1xf32>
    %141 = arith.addf %139, %140 : vector<8x1xf32>
    %cst_51 = arith.constant 1.000000e+00 : f32
    %142 = vector.broadcast %cst_51 : f32 to vector<8x1xf32>
    %143 = arith.divf %142, %141 : vector<8x1xf32>
    %cst_52 = arith.constant dense<0.000000e+00> : vector<8x32xf32>
    %144 = tpu.matmul %137, %134, %cst_52 {dimension_numbers = #tpu.dot_dimension_numbers<[1], [0], [0], [1], [0, 0, 1, 1], [], []>} : vector<8x8xf32>, vector<8x32xf32>, vector<8x32xf32> -> vector<8x32xf32>
    %145 = vector.broadcast %143 : vector<8x1xf32> to vector<8x32xf32>
    %146 = arith.mulf %145, %144 : vector<8x32xf32>
    %147 = arith.addf %121, %146 : vector<8x32xf32>
    %c24_i32_53 = arith.constant 24 : i32
    %148 = vector.broadcast %c24_i32_53 : i32 to vector<1x32xi32>
    %149 = arith.cmpi sge, %68, %148 : vector<1x32xi32>
    %c32_i32 = arith.constant 32 : i32
    %150 = vector.broadcast %c32_i32 : i32 to vector<1x32xi32>
    %151 = arith.cmpi slt, %68, %150 : vector<1x32xi32>
    %152 = arith.andi %149, %151 : vector<1x32xi1>
    %cst_54 = arith.constant 0.000000e+00 : f32
    %153 = vector.shape_cast %152 : vector<1x32xi1> to vector<1x32xi1>
    %154 = vector.broadcast %153 : vector<1x32xi1> to vector<8x32xi1>
    %155 = vector.broadcast %cst_54 : f32 to vector<8x32xf32>
    %156 = arith.select %154, %41, %155 : vector<8x32xi1>, vector<8x32xf32>
    %cst_55 = arith.constant 0.000000e+00 : f32
    %157 = vector.shape_cast %152 : vector<1x32xi1> to vector<1x32xi1>
    %158 = vector.broadcast %157 : vector<1x32xi1> to vector<8x32xi1>
    %159 = vector.broadcast %cst_55 : f32 to vector<8x32xf32>
    %160 = arith.select %158, %18, %159 : vector<8x32xi1>, vector<8x32xf32>
    %cst_56 = arith.constant dense<0.000000e+00> : vector<8x8xf32>
    %161 = tpu.matmul %156, %64, %cst_56 {dimension_numbers = #tpu.dot_dimension_numbers<[1], [1], [0], [0], [0, 0, 1, 0], [], []>} : vector<8x32xf32>, vector<8x32xf32>, vector<8x8xf32> -> vector<8x8xf32>
    %cst_57 = arith.constant 0.000000e+00 : f32
    %162 = vector.broadcast %cst_57 : f32 to vector<8x8xf32>
    %163 = arith.select %67, %161, %162 : vector<8x8xi1>, vector<8x8xf32>
    %cst_58 = arith.constant dense<0.000000e+00> : vector<8xf32>
    %164 = vector.multi_reduction <add>, %163, %cst_58 [1] : vector<8x8xf32> to vector<8xf32>
    %165 = vector.shape_cast %164 : vector<8xf32> to vector<8x1xf32>
    %cst_59 = arith.constant 9.99999997E-7 : f32
    %166 = vector.broadcast %cst_59 : f32 to vector<8x1xf32>
    %167 = arith.addf %165, %166 : vector<8x1xf32>
    %cst_60 = arith.constant 1.000000e+00 : f32
    %168 = vector.broadcast %cst_60 : f32 to vector<8x1xf32>
    %169 = arith.divf %168, %167 : vector<8x1xf32>
    %cst_61 = arith.constant dense<0.000000e+00> : vector<8x32xf32>
    %170 = tpu.matmul %163, %160, %cst_61 {dimension_numbers = #tpu.dot_dimension_numbers<[1], [0], [0], [1], [0, 0, 1, 1], [], []>} : vector<8x8xf32>, vector<8x32xf32>, vector<8x32xf32> -> vector<8x32xf32>
    %171 = vector.broadcast %169 : vector<8x1xf32> to vector<8x32xf32>
    %172 = arith.mulf %171, %170 : vector<8x32xf32>
    %173 = arith.addf %147, %172 : vector<8x32xf32>
    %c0_62 = arith.constant 0 : index
    %c0_63 = arith.constant 0 : index
    %174 = vector.load %arg8[%c0_62, %c0_63] : memref<32x32xf32, #tpu.memory_space<vmem>>, vector<32x32xf32>
    %c0_64 = arith.constant 0 : index
    %c0_65 = arith.constant 0 : index
    %175 = vector.load %arg9[%c0_64, %c0_65] : memref<1x32xf32, #tpu.memory_space<vmem>>, vector<1x32xf32>
    %cst_66 = arith.constant dense<0.000000e+00> : vector<8x32xf32>
    %176 = tpu.matmul %173, %174, %cst_66 {dimension_numbers = #tpu.dot_dimension_numbers<[1], [1], [0], [0], [0, 0, 1, 0], [], []>} : vector<8x32xf32>, vector<32x32xf32>, vector<8x32xf32> -> vector<8x32xf32>
    %177 = vector.broadcast %175 : vector<1x32xf32> to vector<8x32xf32>
    %178 = arith.addf %176, %177 : vector<8x32xf32>
    %c0_67 = arith.constant 0 : index
    %c0_68 = arith.constant 0 : index
    %c0_69 = arith.constant 0 : index
    %179 = vector.load %arg10[%c0_67, %c0_68, %c0_69] : memref<1x8x32xf32, #tpu.memory_space<vmem>>, vector<1x8x32xf32>
    %180 = vector.shape_cast %179 : vector<1x8x32xf32> to vector<8x32xf32>
    %181 = vector.shape_cast %178 : vector<8x32xf32> to vector<1x8x32xf32>
    tpu.vector_store %arg10[%c0_67, %c0_68, %c0_69], %181 {strides = array<i32>} : memref<1x8x32xf32, #tpu.memory_space<vmem>>, vector<1x8x32xf32>,
    return
  }
  func.func @transform_0(%arg0: i32) -> (i32, i32, i32) {
    %c0_i32 = arith.constant 0 : i32
    %c0_i32_0 = arith.constant 0 : i32
    %c0_i32_1 = arith.constant 0 : i32
    return %arg0, %c0_i32, %c0_i32_0 : i32, i32, i32
  }
  func.func @transform_1(%arg0: i32) -> (i32, i32) {
    %c0_i32 = arith.constant 0 : i32
    %c0_i32_0 = arith.constant 0 : i32
    %c0_i32_1 = arith.constant 0 : i32
    return %c0_i32, %c0_i32_0 : i32, i32
  }
  func.func @transform_2(%arg0: i32) -> (i32, i32) {
    %c0_i32 = arith.constant 0 : i32
    %c0_i32_0 = arith.constant 0 : i32
    %c0_i32_1 = arith.constant 0 : i32
    return %c0_i32, %c0_i32_0 : i32, i32
  }
  func.func @transform_3(%arg0: i32) -> (i32, i32) {
    %c0_i32 = arith.constant 0 : i32
    %c0_i32_0 = arith.constant 0 : i32
    %c0_i32_1 = arith.constant 0 : i32
    return %c0_i32, %c0_i32_0 : i32, i32
  }
  func.func @transform_4(%arg0: i32) -> (i32, i32) {
    %c0_i32 = arith.constant 0 : i32
    %c0_i32_0 = arith.constant 0 : i32
    %c0_i32_1 = arith.constant 0 : i32
    return %c0_i32, %c0_i32_0 : i32, i32
  }
  func.func @transform_5(%arg0: i32) -> (i32, i32) {
    %c0_i32 = arith.constant 0 : i32
    %c0_i32_0 = arith.constant 0 : i32
    %c0_i32_1 = arith.constant 0 : i32
    return %c0_i32, %c0_i32_0 : i32, i32
  }
  func.func @transform_6(%arg0: i32) -> (i32, i32) {
    %c0_i32 = arith.constant 0 : i32
    %c0_i32_0 = arith.constant 0 : i32
    %c0_i32_1 = arith.constant 0 : i32
    return %c0_i32, %c0_i32_0 : i32, i32
  }
  func.func @transform_7(%arg0: i32) -> (i32, i32) {
    %c0_i32 = arith.constant 0 : i32
    %c0_i32_0 = arith.constant 0 : i32
    %c0_i32_1 = arith.constant 0 : i32
    return %c0_i32, %c0_i32_0 : i32, i32
  }
  func.func @transform_8(%arg0: i32) -> (i32, i32) {
    %c0_i32 = arith.constant 0 : i32
    %c0_i32_0 = arith.constant 0 : i32
    %c0_i32_1 = arith.constant 0 : i32
    return %c0_i32, %c0_i32_0 : i32, i32
  }
  func.func @transform_9(%arg0: i32) -> (i32, i32, i32) {
    %c0_i32 = arith.constant 0 : i32
    %c0_i32_0 = arith.constant 0 : i32
    %c0_i32_1 = arith.constant 0 : i32
    return %arg0, %c0_i32, %c0_i32_0 : i32, i32, i32
  }
}

</mosaic_0001>

<llo_original>
// kernel: rebased_attention.1
$region0: #{rebased_attention.1}
  #allocation0 [shape = 'u32[]', space=smem, size = 0x4, offset = 0x4, fixed_abs, tag = 'smem constant byte address 0x4 - core index']
  #allocation1 [shape = 'u32[144,128]{1,0:T(1,128)}', space=vmem, size = 0x12000, scoped, tag = 'internal scratch']
  %s0 = inlined_call_operand.vmem [shape: f32[2,8,32], index: 0, kind: input, shape index: {}]
  %s1 = inlined_call_operand.vmem [shape: f32[96,32], index: 1, kind: input, shape index: {}]
  %s2 = inlined_call_operand.vmem [shape: f32[3,32], index: 2, kind: input, shape index: {}]
  %s3 = inlined_call_operand.vmem [shape: f32[1,32], index: 3, kind: input, shape index: {}]
  %s4 = inlined_call_operand.vmem [shape: f32[1,32], index: 4, kind: input, shape index: {}]
  %s5 = inlined_call_operand.vmem [shape: f32[1,32], index: 5, kind: input, shape index: {}]
  %s6 = inlined_call_operand.vmem [shape: f32[1,32], index: 6, kind: input, shape index: {}]
  %s7 = inlined_call_operand.vmem [shape: f32[32,32], index: 7, kind: input, shape index: {}]
  %s8 = inlined_call_operand.vmem [shape: f32[1,32], index: 8, kind: input, shape index: {}]
  %s9 = inlined_call_operand.hbm [shape: f32[2,8,32], index: 9, kind: output, shape index: {}]
  %s10 = sld [smem:[#allocation0]]
  $region69: #{rebased_attention.1} parent=0
    _
  %s12 = ssub.s32 1, %s10
  %s13 = scalar_select 0, %s12, %s10
  $region1: #{rebased_attention.1} parent=0
    #allocation2 [shape = 'u8[8192]{0}', space=vmem, size = 0x2000, scoped, tag = 'output window, operand 0']
    #allocation3 [shape = 's32[2]{0}', space=sflag, size = 0x8, scoped, tag = 'scoped memory for rebased_attention.1']
    %14 = vsyncpa [#allocation3], 0
    %s15 = scalar_lea.sflag [#allocation3], 1
    %16 = vsyncpa %s15, 0
    loop: start=0, step=1, limit=4
    $region2: #{rebased_attention.1} parent=1 // loop_pre_header
      _
    $region3: #{rebased_attention.1} parent=1 // loop_header
      %s18 = sphi 0, %s22
      %p19 = scmp.ge.s32.totalorder %s18, 4
      %s28 = sphi 0, %s30
      %s31 = sphi 0, %s28
      %s32 = sphi 0, %s31
      %s48 = sphi 0, %s32
      %s52 = sphi 0, %s52
      %s54 = sphi 0, %s52
      %s55 = sphi 0, %s54
      %s69 = sphi 0, %s55
      %s73 = sphi 0, %s73
      %s75 = sphi 0, %s73
      %s76 = sphi 0, %s75
      %s90 = sphi 0, %s76
      %s94 = sphi 0, %s94
      %s96 = sphi 0, %s94
      %s97 = sphi 0, %s96
      %s111 = sphi 0, %s97
      %s115 = sphi 0, %s115
      %s117 = sphi 0, %s115
      %s118 = sphi 0, %s117
      %s132 = sphi 0, %s118
      %s136 = sphi 0, %s136
      %s138 = sphi 0, %s136
      %s139 = sphi 0, %s138
      %s153 = sphi 0, %s139
      %s157 = sphi 0, %s157
      %s159 = sphi 0, %s157
      %s160 = sphi 0, %s159
      %s174 = sphi 0, %s160
      %s178 = sphi 0, %s178
      %s180 = sphi 0, %s178
      %s181 = sphi 0, %s180
      %s195 = sphi 0, %s181
      %s199 = sphi 0, %s199
      %s201 = sphi 0, %s199
      %s202 = sphi 0, %s201
      %s216 = sphi 0, %s202
      %s222 = sphi 0, %s224
      %s225 = sphi 0, %s222
      %s226 = sphi 0, %s225
      %s242 = sphi 0, %s226
    $region4: #{rebased_attention.1} parent=1 // loop_header_branch
      %21 = sbr.rel (%p19) target = $region8
    $region5: #{rebased_attention.1} parent=1 // loop_body
      %s23 = ssub.s32 %s18, 1
      %s24 = ssub.s32 %s18, 2
      %s25 = sadd.s32 %s18, 1
      %s26 = ssub.s32 %s18, %s25
      %p27 = scmp.eq.s32.totalorder %s26, 0
      %s29 = sadd.s32 %s28, 1
      %s30 = scalar_select %p27, %s28, %s29
      %p33 = pneg %p27
      %p34 = scmp.eq.s32.totalorder %s18, 1
      %p35 = por %p33, %p34
      %p36 = scmp.ne.s32.totalorder %s28, %s31
      %p37 = scmp.eq.s32.totalorder %s18, 0
      %p38 = por %p36, %p37
      %p39 = scmp.ne.s32.totalorder %s28, %s31
      %p40 = scmp.eq.s32.totalorder %s23, 1
      %p41 = por %p39, %p40
      %p42 = scmp.ne.s32.totalorder %s31, %s32
      %p43 = scmp.eq.s32.totalorder %s23, 0
      %p44 = por %p42, %p43
      %p45 = scmp.ne.s32.totalorder %s31, %s32
      %p46 = scmp.eq.s32.totalorder %s24, 1
      %p47 = por %p45, %p46
      %p49 = scmp.ne.s32.totalorder %s32, %s48
      %p50 = scmp.eq.s32.totalorder %s24, 0
      %p51 = por %p49, %p50
      %s53 = sadd.s32 %s52, 1
      %p56 = scmp.eq.s32.totalorder %s18, 1
      %p57 = scmp.ne.s32.totalorder %s52, %s54
      %p58 = scmp.eq.s32.totalorder %s18, 0
      %p59 = por %p57, %p58
      %p60 = scmp.ne.s32.totalorder %s52, %s54
      %p61 = scmp.eq.s32.totalorder %s23, 1
      %p62 = por %p60, %p61
      %p63 = scmp.ne.s32.totalorder %s54, %s55
      %p64 = scmp.eq.s32.totalorder %s23, 0
      %p65 = por %p63, %p64
      %p66 = scmp.ne.s32.totalorder %s54, %s55
      %p67 = scmp.eq.s32.totalorder %s24, 1
      %p68 = por %p66, %p67
      %p70 = scmp.ne.s32.totalorder %s55, %s69
      %p71 = scmp.eq.s32.totalorder %s24, 0
      %p72 = por %p70, %p71
      %s74 = sadd.s32 %s73, 1
      %p77 = scmp.eq.s32.totalorder %s18, 1
      %p78 = scmp.ne.s32.totalorder %s73, %s75
      %p79 = scmp.eq.s32.totalorder %s18, 0
      %p80 = por %p78, %p79
      %p81 = scmp.ne.s32.totalorder %s73, %s75
      %p82 = scmp.eq.s32.totalorder %s23, 1
      %p83 = por %p81, %p82
      %p84 = scmp.ne.s32.totalorder %s75, %s76
      %p85 = scmp.eq.s32.totalorder %s23, 0
      %p86 = por %p84, %p85
      %p87 = scmp.ne.s32.totalorder %s75, %s76
      %p88 = scmp.eq.s32.totalorder %s24, 1
      %p89 = por %p87, %p88
      %p91 = scmp.ne.s32.totalorder %s76, %s90
      %p92 = scmp.eq.s32.totalorder %s24, 0
      %p93 = por %p91, %p92
      %s95 = sadd.s32 %s94, 1
      %p98 = scmp.eq.s32.totalorder %s18, 1
      %p99 = scmp.ne.s32.totalorder %s94, %s96
      %p100 = scmp.eq.s32.totalorder %s18, 0
      %p101 = por %p99, %p100
      %p102 = scmp.ne.s32.totalorder %s94, %s96
      %p103 = scmp.eq.s32.totalorder %s23, 1
      %p104 = por %p102, %p103
      %p105 = scmp.ne.s32.totalorder %s96, %s97
      %p106 = scmp.eq.s32.totalorder %s23, 0
      %p107 = por %p105, %p106
      %p108 = scmp.ne.s32.totalorder %s96, %s97
      %p109 = scmp.eq.s32.totalorder %s24, 1
      %p110 = por %p108, %p109
      %p112 = scmp.ne.s32.totalorder %s97, %s111
      %p113 = scmp.eq.s32.totalorder %s24, 0
      %p114 = por %p112, %p113
      %s116 = sadd.s32 %s115, 1
      %p119 = scmp.eq.s32.totalorder %s18, 1
      %p120 = scmp.ne.s32.totalorder %s115, %s117
      %p121 = scmp.eq.s32.totalorder %s18, 0
      %p122 = por %p120, %p121
      %p123 = scmp.ne.s32.totalorder %s115, %s117
      %p124 = scmp.eq.s32.totalorder %s23, 1
      %p125 = por %p123, %p124
      %p126 = scmp.ne.s32.totalorder %s117, %s118
      %p127 = scmp.eq.s32.totalorder %s23, 0
      %p128 = por %p126, %p127
      %p129 = scmp.ne.s32.totalorder %s117, %s118
      %p130 = scmp.eq.s32.totalorder %s24, 1
      %p131 = por %p129, %p130
      %p133 = scmp.ne.s32.totalorder %s118, %s132
      %p134 = scmp.eq.s32.totalorder %s24, 0
      %p135 = por %p133, %p134
      %s137 = sadd.s32 %s136, 1
      %p140 = scmp.eq.s32.totalorder %s18, 1
      %p141 = scmp.ne.s32.totalorder %s136, %s138
      %p142 = scmp.eq.s32.totalorder %s18, 0
      %p143 = por %p141, %p142
      %p144 = scmp.ne.s32.totalorder %s136, %s138
      %p145 = scmp.eq.s32.totalorder %s23, 1
      %p146 = por %p144, %p145
      %p147 = scmp.ne.s32.totalorder %s138, %s139
      %p148 = scmp.eq.s32.totalorder %s23, 0
      %p149 = por %p147, %p148
      %p150 = scmp.ne.s32.totalorder %s138, %s139
      %p151 = scmp.eq.s32.totalorder %s24, 1
      %p152 = por %p150, %p151
      %p154 = scmp.ne.s32.totalorder %s139, %s153
      %p155 = scmp.eq.s32.totalorder %s24, 0
      %p156 = por %p154, %p155
      %s158 = sadd.s32 %s157, 1
      %p161 = scmp.eq.s32.totalorder %s18, 1
      %p162 = scmp.ne.s32.totalorder %s157, %s159
      %p163 = scmp.eq.s32.totalorder %s18, 0
      %p164 = por %p162, %p163
      %p165 = scmp.ne.s32.totalorder %s157, %s159
      %p166 = scmp.eq.s32.totalorder %s23, 1
      %p167 = por %p165, %p166
      %p168 = scmp.ne.s32.totalorder %s159, %s160
      %p169 = scmp.eq.s32.totalorder %s23, 0
      %p170 = por %p168, %p169
      %p171 = scmp.ne.s32.totalorder %s159, %s160
      %p172 = scmp.eq.s32.totalorder %s24, 1
      %p173 = por %p171, %p172
      %p175 = scmp.ne.s32.totalorder %s160, %s174
      %p176 = scmp.eq.s32.totalorder %s24, 0
      %p177 = por %p175, %p176
      %s179 = sadd.s32 %s178, 1
      %p182 = scmp.eq.s32.totalorder %s18, 1
      %p183 = scmp.ne.s32.totalorder %s178, %s180
      %p184 = scmp.eq.s32.totalorder %s18, 0
      %p185 = por %p183, %p184
      %p186 = scmp.ne.s32.totalorder %s178, %s180
      %p187 = scmp.eq.s32.totalorder %s23, 1
      %p188 = por %p186, %p187
      %p189 = scmp.ne.s32.totalorder %s180, %s181
      %p190 = scmp.eq.s32.totalorder %s23, 0
      %p191 = por %p189, %p190
      %p192 = scmp.ne.s32.totalorder %s180, %s181
      %p193 = scmp.eq.s32.totalorder %s24, 1
      %p194 = por %p192, %p193
      %p196 = scmp.ne.s32.totalorder %s181, %s195
      %p197 = scmp.eq.s32.totalorder %s24, 0
      %p198 = por %p196, %p197
      %s200 = sadd.s32 %s199, 1
      %p203 = scmp.eq.s32.totalorder %s18, 1
      %p204 = scmp.ne.s32.totalorder %s199, %s201
      %p205 = scmp.eq.s32.totalorder %s18, 0
      %p206 = por %p204, %p205
      %p207 = scmp.ne.s32.totalorder %s199, %s201
      %p208 = scmp.eq.s32.totalorder %s23, 1
      %p209 = por %p207, %p208
      %p210 = scmp.ne.s32.totalorder %s201, %s202
      %p211 = scmp.eq.s32.totalorder %s23, 0
      %p212 = por %p210, %p211
      %p213 = scmp.ne.s32.totalorder %s201, %s202
      %p214 = scmp.eq.s32.totalorder %s24, 1
      %p215 = por %p213, %p214
      %p217 = scmp.ne.s32.totalorder %s202, %s216
      %p218 = scmp.eq.s32.totalorder %s24, 0
      %p219 = por %p217, %p218
      %s220 = ssub.s32 %s18, %s25
      %p221 = scmp.eq.s32.totalorder %s220, 0
      %s223 = sadd.s32 %s222, 1
      %s224 = scalar_select %p221, %s222, %s223
      %p227 = pneg %p221
      %p228 = scmp.eq.s32.totalorder %s18, 1
      %p229 = por %p227, %p228
      %p230 = scmp.ne.s32.totalorder %s222, %s225
      %p231 = scmp.eq.s32.totalorder %s18, 0
      %p232 = por %p230, %p231
      %p233 = scmp.ne.s32.totalorder %s222, %s225
      %p234 = scmp.eq.s32.totalorder %s23, 1
      %p235 = por %p233, %p234
      %p236 = scmp.ne.s32.totalorder %s225, %s226
      %p237 = scmp.eq.s32.totalorder %s23, 0
      %p238 = por %p236, %p237
      %p239 = scmp.ne.s32.totalorder %s225, %s226
      %p240 = scmp.eq.s32.totalorder %s24, 1
      %p241 = por %p239, %p240
      %p243 = scmp.ne.s32.totalorder %s226, %s242
      %p244 = scmp.eq.s32.totalorder %s24, 0
      %p245 = por %p243, %p244
      %p246 = scmp.le.s32.totalorder 1, %s18
      %p247 = scmp.lt.s32.totalorder %s18, 3
      %p248 = pnand %p246, %p247
      %p249 = pneg %p248
      // Predicated region
      $region9: #{rebased_attention.1} parent=5 // pred_check
        _
      $region10: #{rebased_attention.1} parent=5 // pred_check_branch
        %251 = sbr.rel (%p248) target = $region12
      $region11: #{rebased_attention.1} parent=5 // pred_region
        %s252 = ssub.s32 %s18, 1
        // Predicated region
        $region13: #{rebased_attention.1} parent=11 // pred_check
          %p253 = pneg %p65
        $region14: #{rebased_attention.1} parent=11 // pred_check_branch
          %255 = sbr.rel (%p253) target = $region16
        $region15: #{rebased_attention.1} parent=11 // pred_region
          _
        $region16: #{rebased_attention.1} parent=11 // pred_fallthru
          _
        // Predicated region
        $region17: #{rebased_attention.1} parent=11 // pred_check
          %p256 = pneg %p86
        $region18: #{rebased_attention.1} parent=11 // pred_check_branch
          %258 = sbr.rel (%p256) target = $region20
        $region19: #{rebased_attention.1} parent=11 // pred_region
          _
        $region20: #{rebased_attention.1} parent=11 // pred_fallthru
          _
        // Predicated region
        $region21: #{rebased_attention.1} parent=11 // pred_check
          %p259 = pneg %p107
        $region22: #{rebased_attention.1} parent=11 // pred_check_branch
          %261 = sbr.rel (%p259) target = $region24
        $region23: #{rebased_attention.1} parent=11 // pred_region
          _
        $region24: #{rebased_attention.1} parent=11 // pred_fallthru
          _
        // Predicated region
        $region25: #{rebased_attention.1} parent=11 // pred_check
          %p262 = pneg %p128
        $region26: #{rebased_attention.1} parent=11 // pred_check_branch
          %264 = sbr.rel (%p262) target = $region28
        $region27: #{rebased_attention.1} parent=11 // pred_region
          _
        $region28: #{rebased_attention.1} parent=11 // pred_fallthru
          _
        // Predicated region
        $region29: #{rebased_attention.1} parent=11 // pred_check
          %p265 = pneg %p149
        $region30: #{rebased_attention.1} parent=11 // pred_check_branch
          %267 = sbr.rel (%p265) target = $region32
        $region31: #{rebased_attention.1} parent=11 // pred_region
          _
        $region32: #{rebased_attention.1} parent=11 // pred_fallthru
          _
        // Predicated region
        $region33: #{rebased_attention.1} parent=11 // pred_check
          %p268 = pneg %p170
        $region34: #{rebased_attention.1} parent=11 // pred_check_branch
          %270 = sbr.rel (%p268) target = $region36
        $region35: #{rebased_attention.1} parent=11 // pred_region
          _
        $region36: #{rebased_attention.1} parent=11 // pred_fallthru
          _
        // Predicated region
        $region37: #{rebased_attention.1} parent=11 // pred_check
          %p271 = pneg %p191
        $region38: #{rebased_attention.1} parent=11 // pred_check_branch
          %273 = sbr.rel (%p271) target = $region40
        $region39: #{rebased_attention.1} parent=11 // pred_region
          _
        $region40: #{rebased_attention.1} parent=11 // pred_fallthru
          _
        // Predicated region
        $region41: #{rebased_attention.1} parent=11 // pred_check
          %p274 = pneg %p212
        $region42: #{rebased_attention.1} parent=11 // pred_check_branch
          %276 = sbr.rel (%p274) target = $region44
        $region43: #{rebased_attention.1} parent=11 // pred_region
          _
        $region44: #{rebased_attention.1} parent=11 // pred_fallthru
          _
      $region12: #{rebased_attention.1} parent=5 // pred_fallthru
        _
      %p277 = scmp.lt.s32.totalorder %s18, 2
      // Predicated region
      $region45: #{rebased_attention.1} parent=5 // pred_check
        %p278 = pneg %p277
      $region46: #{rebased_attention.1} parent=5 // pred_check_branch
        %280 = sbr.rel (%p278) target = $region48
      $region47: #{rebased_attention.1} parent=5 // pred_region
        // Predicated region
        $region49: #{rebased_attention.1} parent=47 // pred_check
          %p281 = pneg %p38
        $region50: #{rebased_attention.1} parent=47 // pred_check_branch
          %283 = sbr.rel (%p281) target = $region52
        $region51: #{rebased_attention.1} parent=47 // pred_region
          %p284 = scmp.lt.s32.totalorder %s18, 1
          %s285 = scalar_select %p284, %s18, 1
          %s286 = smul.addr %s285, 8
          %s287 = scalar_lea.vmem %s0, %s286
        $region52: #{rebased_attention.1} parent=47 // pred_fallthru
          _
      $region48: #{rebased_attention.1} parent=5 // pred_fallthru
        _
      %p288 = scmp.le.s32.totalorder 1, %s18
      %p289 = scmp.lt.s32.totalorder %s18, 3
      %p290 = pnand %p288, %p289
      %p291 = pneg %p290
      // Predicated region
      $region53: #{rebased_attention.1} parent=5 // pred_check
        _
      $region54: #{rebased_attention.1} parent=5 // pred_check_branch
        %293 = sbr.rel (%p290) target = $region56
      $region55: #{rebased_attention.1} parent=5 // pred_region
        %s294 = ssub.s32 %s18, 1
        %p295 = scmp.lt.s32.totalorder %s23, 1
        %s296 = scalar_select %p295, %s23, 1
        %s297 = smul.addr %s296, 8
        %s298 = scalar_lea.vmem %s0, %s297
        %p299 = pneg %p44
        %p300 = pneg %p41
        %p301 = pneg %p65
        %p302 = pneg %p62
        %p303 = pneg %p86
        %p304 = pneg %p83
        %p305 = pneg %p107
        %p306 = pneg %p104
        %p307 = pneg %p128
        %p308 = pneg %p125
        %p309 = pneg %p149
        %p310 = pneg %p146
        %p311 = pneg %p170
        %p312 = pneg %p167
        %p313 = pneg %p191
        %p314 = pneg %p188
        %p315 = pneg %p212
        %p316 = pneg %p209
        %p317 = pneg %p238
        %p318 = pneg %p235
        %s319 = sand.u32 %s225, 1
        %s320 = scalar_lea.sflag [#allocation3], %s319
        %s321 = sand.u32 %s225, 1
        %s322 = smul.addr %s321, 8
        %s323 = scalar_lea.vmem [#allocation2], %s322
        %p324 = scmp.lt.s32.totalorder %s23, 1
        %s325 = scalar_select %p324, %s23, 1
        %s326 = smul.addr %s325, 8
        %s327 = scalar_lea.vmem %s0, %s326
        %v328 = vld [vmem:[%s327] sm:$0xff]
        %v329 = vld [vmem:[%s1] sm:$0xff]
        %v330 = vld [vmem:[%s1 + $0x8] sm:$0xff]
        %v331 = vld [vmem:[%s1 + $0x10] sm:$0xff]
        %v332 = vld [vmem:[%s1 + $0x18] sm:$0xff]
        %v333 = vld [vmem:[%s1 + $0x20] sm:$0xff]
        %v334 = vld [vmem:[%s1 + $0x28] sm:$0xff]
        %v335 = vld [vmem:[%s1 + $0x30] sm:$0xff]
        %v336 = vld [vmem:[%s1 + $0x38] sm:$0xff]
        %v337 = vld [vmem:[%s1 + $0x40] sm:$0xff]
        %v338 = vld [vmem:[%s1 + $0x48] sm:$0xff]
        %v339 = vld [vmem:[%s1 + $0x50] sm:$0xff]
        %v340 = vld [vmem:[%s1 + $0x58] sm:$0xff]
        %v341 = vld [vmem:[%s2] sm:$0x7]
        %v342 = vlaneseq
        %v343 = vshrl.u32 %v342, 7
        %v344 = vsub.s32 0, %v343
        %v345 = vrot.slane %v341, %v344
        %vm346 = vcmask 261120
        %v348 = vsel %vm346, %v328, 0
        %v351 = vsel %vm346, %v329, 0
        %v354 = vsel %vm346, %v330, 0
        %v357 = vsel %vm346, %v331, 0
        %v360 = vsel %vm346, %v332, 0
        %362 = vmatprep.subr.mxu0 0.0
        %363 = vmatpush1.xpose.msra.mxu0 %v351
        %364 = vmatprep.subr.mxu0 0.0
        %365 = vmatpush1.xpose.msra.mxu0 %v354
        %366 = vmatprep.subr.mxu0 0.0
        %367 = vmatpush1.xpose.msra.mxu0 %v357
        %368 = vmatprep.subr.mxu0 0.0
        %369 = vmatpush1.xpose.msra.mxu0 %v360
        %370 = vmatprep.subr.mxu0 0.0
        %371 = vmatpush1.xpose.msra.mxu0 0.0
        %372 = vmatprep.subr.mxu0 0.0
        %373 = vmatpush1.xpose.msra.mxu0 0.0
        %374 = vmatprep.subr.mxu0 0.0
        %375 = vmatpush1.xpose.msra.mxu0 0.0
        %376 = vmatprep.subr.mxu0 0.0
        %377 = vmatpush1.xpose.msra.mxu0 0.0
        %378 = vmatprep.subr.mxu0 0.0
        %379 = vmatpush1.xpose.msra.mxu0 0.0
        %380 = vmatprep.subr.mxu0 0.0
        %381 = vmatpush1.xpose.msra.mxu0 0.0
        %382 = vmatprep.subr.mxu0 0.0
        %383 = vmatpush1.xpose.msra.mxu0 0.0
        %384 = vmatprep.subr.mxu0 0.0
        %385 = vmatpush1.xpose.msra.mxu0 0.0
        %386 = vmatprep.subr.mxu0 0.0
        %387 = vmatpush1.xpose.msra.mxu0 0.0
        %388 = vmatprep.subr.mxu0 0.0
        %389 = vmatpush1.xpose.msra.mxu0 0.0
        %390 = vmatprep.subr.mxu0 0.0
        %391 = vmatpush1.xpose.msra.mxu0 0.0
        %392 = vmatprep.subr.mxu0 0.0
        %393 = vmatpush1.xpose.msra.mxu0 0.0
        %394 = vmatprep.subr.mxu0 0.0
        %395 = vmatpush1.xpose.msra.mxu0 0.0
        %396 = vmatprep.subr.mxu0 0.0
        %397 = vmatpush1.xpose.msra.mxu0 0.0
        %398 = vmatprep.subr.mxu0 0.0
        %399 = vmatpush1.xpose.msra.mxu0 0.0
        %400 = vmatprep.subr.mxu0 0.0
        %401 = vmatpush1.xpose.msra.mxu0 0.0
        %402 = vmatprep.subr.mxu0 0.0
        %403 = vmatpush1.xpose.msra.mxu0 0.0
        %404 = vmatprep.subr.mxu0 0.0
        %405 = vmatpush1.xpose.msra.mxu0 0.0
        %406 = vmatprep.subr.mxu0 0.0
        %407 = vmatpush1.xpose.msra.mxu0 0.0
        %408 = vmatprep.subr.mxu0 0.0
        %409 = vmatpush1.xpose.msra.mxu0 0.0
        %410 = vmatprep.subr.mxu0 0.0
        %411 = vmatpush1.xpose.msra.mxu0 0.0
        %412 = vmatprep.subr.mxu0 0.0
        %413 = vmatpush1.xpose.msra.mxu0 0.0
        %414 = vmatprep.subr.mxu0 0.0
        %415 = vmatpush1.xpose.msra.mxu0 0.0
        %416 = vmatprep.subr.mxu0 0.0
        %417 = vmatpush1.xpose.msra.mxu0 0.0
        %418 = vmatprep.subr.mxu0 0.0
        %419 = vmatpush1.xpose.msra.mxu0 0.0
        %420 = vmatprep.subr.mxu0 0.0
        %421 = vmatpush1.xpose.msra.mxu0 0.0
        %422 = vmatprep.subr.mxu0 0.0
        %423 = vmatpush1.xpose.msra.mxu0 0.0
        %424 = vmatprep.subr.mxu0 0.0
        %425 = vmatpush1.xpose.msra.mxu0 0.0
        %426 = vmatprep.mubr.f32.mxu0 0.0
        %427 = vmatmul.mubr.f32.gmra.mrb[0].mxu0 %v348
        %v428 = vpop.f32.mrb[0].mxu0
        %v429 = vadd.f32 %v345, %v428
        %v430 = vpop.f32.mrb[0].mxu0
        %431 = vdwg.mxu0
        %v432 = vlaneseq
        %v433 = vshrl.u32 %v432, 7
        %v434 = vsub.s32 1, %v433
        %v435 = vrot.slane %v341, %v434
        %v437 = vsel %vm346, %v333, 0
        %v440 = vsel %vm346, %v334, 0
        %v443 = vsel %vm346, %v335, 0
        %v446 = vsel %vm346, %v336, 0
        %448 = vmatprep.subr.mxu0 0.0
        %449 = vmatpush1.xpose.msra.mxu0 %v437
        %450 = vmatprep.subr.mxu0 0.0
        %451 = vmatpush1.xpose.msra.mxu0 %v440
        %452 = vmatprep.subr.mxu0 0.0
        %453 = vmatpush1.xpose.msra.mxu0 %v443
        %454 = vmatprep.subr.mxu0 0.0
        %455 = vmatpush1.xpose.msra.mxu0 %v446
        %456 = vmatprep.subr.mxu0 0.0
        %457 = vmatpush1.xpose.msra.mxu0 0.0
        %458 = vmatprep.subr.mxu0 0.0
        %459 = vmatpush1.xpose.msra.mxu0 0.0
        %460 = vmatprep.subr.mxu0 0.0
        %461 = vmatpush1.xpose.msra.mxu0 0.0
        %462 = vmatprep.subr.mxu0 0.0
        %463 = vmatpush1.xpose.msra.mxu0 0.0
        %464 = vmatprep.subr.mxu0 0.0
        %465 = vmatpush1.xpose.msra.mxu0 0.0
        %466 = vmatprep.subr.mxu0 0.0
        %467 = vmatpush1.xpose.msra.mxu0 0.0
        %468 = vmatprep.subr.mxu0 0.0
        %469 = vmatpush1.xpose.msra.mxu0 0.0
        %470 = vmatprep.subr.mxu0 0.0
        %471 = vmatpush1.xpose.msra.mxu0 0.0
        %472 = vmatprep.subr.mxu0 0.0
        %473 = vmatpush1.xpose.msra.mxu0 0.0
        %474 = vmatprep.subr.mxu0 0.0
        %475 = vmatpush1.xpose.msra.mxu0 0.0
        %476 = vmatprep.subr.mxu0 0.0
        %477 = vmatpush1.xpose.msra.mxu0 0.0
        %478 = vmatprep.subr.mxu0 0.0
        %479 = vmatpush1.xpose.msra.mxu0 0.0
        %480 = vmatprep.subr.mxu0 0.0
        %481 = vmatpush1.xpose.msra.mxu0 0.0
        %482 = vmatprep.subr.mxu0 0.0
        %483 = vmatpush1.xpose.msra.mxu0 0.0
        %484 = vmatprep.subr.mxu0 0.0
        %485 = vmatpush1.xpose.msra.mxu0 0.0
        %486 = vmatprep.subr.mxu0 0.0
        %487 = vmatpush1.xpose.msra.mxu0 0.0
        %488 = vmatprep.subr.mxu0 0.0
        %489 = vmatpush1.xpose.msra.mxu0 0.0
        %490 = vmatprep.subr.mxu0 0.0
        %491 = vmatpush1.xpose.msra.mxu0 0.0
        %492 = vmatprep.subr.mxu0 0.0
        %493 = vmatpush1.xpose.msra.mxu0 0.0
        %494 = vmatprep.subr.mxu0 0.0
        %495 = vmatpush1.xpose.msra.mxu0 0.0
        %496 = vmatprep.subr.mxu0 0.0
        %497 = vmatpush1.xpose.msra.mxu0 0.0
        %498 = vmatprep.subr.mxu0 0.0
        %499 = vmatpush1.xpose.msra.mxu0 0.0
        %500 = vmatprep.subr.mxu0 0.0
        %501 = vmatpush1.xpose.msra.mxu0 0.0
        %502 = vmatprep.subr.mxu0 0.0
        %503 = vmatpush1.xpose.msra.mxu0 0.0
        %504 = vmatprep.subr.mxu0 0.0
        %505 = vmatpush1.xpose.msra.mxu0 0.0
        %506 = vmatprep.subr.mxu0 0.0
        %507 = vmatpush1.xpose.msra.mxu0 0.0
        %508 = vmatprep.subr.mxu0 0.0
        %509 = vmatpush1.xpose.msra.mxu0 0.0
        %510 = vmatprep.subr.mxu0 0.0
        %511 = vmatpush1.xpose.msra.mxu0 0.0
        %512 = vmatprep.mubr.f32.mxu0 0.0
        %513 = vmatmul.mubr.f32.gmra.mrb[0].mxu0 %v348
        %v514 = vpop.f32.mrb[0].mxu0
        %v515 = vadd.f32 %v435, %v514
        %v516 = vpop.f32.mrb[0].mxu0
        %517 = vdwg.mxu0
        %v518 = vlaneseq
        %v519 = vshrl.u32 %v518, 7
        %v520 = vsub.s32 2, %v519
        %v521 = vrot.slane %v341, %v520
        %v523 = vsel %vm346, %v337, 0
        %v526 = vsel %vm346, %v338, 0
        %v529 = vsel %vm346, %v339, 0
        %v532 = vsel %vm346, %v340, 0
        %534 = vmatprep.subr.mxu0 0.0
        %535 = vmatpush1.xpose.msra.mxu0 %v523
        %536 = vmatprep.subr.mxu0 0.0
        %537 = vmatpush1.xpose.msra.mxu0 %v526
        %538 = vmatprep.subr.mxu0 0.0
        %539 = vmatpush1.xpose.msra.mxu0 %v529
        %540 = vmatprep.subr.mxu0 0.0
        %541 = vmatpush1.xpose.msra.mxu0 %v532
        %542 = vmatprep.subr.mxu0 0.0
        %543 = vmatpush1.xpose.msra.mxu0 0.0
        %544 = vmatprep.subr.mxu0 0.0
        %545 = vmatpush1.xpose.msra.mxu0 0.0
        %546 = vmatprep.subr.mxu0 0.0
        %547 = vmatpush1.xpose.msra.mxu0 0.0
        %548 = vmatprep.subr.mxu0 0.0
        %549 = vmatpush1.xpose.msra.mxu0 0.0
        %550 = vmatprep.subr.mxu0 0.0
        %551 = vmatpush1.xpose.msra.mxu0 0.0
        %552 = vmatprep.subr.mxu0 0.0
        %553 = vmatpush1.xpose.msra.mxu0 0.0
        %554 = vmatprep.subr.mxu0 0.0
        %555 = vmatpush1.xpose.msra.mxu0 0.0
        %556 = vmatprep.subr.mxu0 0.0
        %557 = vmatpush1.xpose.msra.mxu0 0.0
        %558 = vmatprep.subr.mxu0 0.0
        %559 = vmatpush1.xpose.msra.mxu0 0.0
        %560 = vmatprep.subr.mxu0 0.0
        %561 = vmatpush1.xpose.msra.mxu0 0.0
        %562 = vmatprep.subr.mxu0 0.0
        %563 = vmatpush1.xpose.msra.mxu0 0.0
        %564 = vmatprep.subr.mxu0 0.0
        %565 = vmatpush1.xpose.msra.mxu0 0.0
        %566 = vmatprep.subr.mxu0 0.0
        %567 = vmatpush1.xpose.msra.mxu0 0.0
        %568 = vmatprep.subr.mxu0 0.0
        %569 = vmatpush1.xpose.msra.mxu0 0.0
        %570 = vmatprep.subr.mxu0 0.0
        %571 = vmatpush1.xpose.msra.mxu0 0.0
        %572 = vmatprep.subr.mxu0 0.0
        %573 = vmatpush1.xpose.msra.mxu0 0.0
        %574 = vmatprep.subr.mxu0 0.0
        %575 = vmatpush1.xpose.msra.mxu0 0.0
        %576 = vmatprep.subr.mxu0 0.0
        %577 = vmatpush1.xpose.msra.mxu0 0.0
        %578 = vmatprep.subr.mxu0 0.0
        %579 = vmatpush1.xpose.msra.mxu0 0.0
        %580 = vmatprep.subr.mxu0 0.0
        %581 = vmatpush1.xpose.msra.mxu0 0.0
        %582 = vmatprep.subr.mxu0 0.0
        %583 = vmatpush1.xpose.msra.mxu0 0.0
        %584 = vmatprep.subr.mxu0 0.0
        %585 = vmatpush1.xpose.msra.mxu0 0.0
        %586 = vmatprep.subr.mxu0 0.0
        %587 = vmatpush1.xpose.msra.mxu0 0.0
        %588 = vmatprep.subr.mxu0 0.0
        %589 = vmatpush1.xpose.msra.mxu0 0.0
        %590 = vmatprep.subr.mxu0 0.0
        %591 = vmatpush1.xpose.msra.mxu0 0.0
        %592 = vmatprep.subr.mxu0 0.0
        %593 = vmatpush1.xpose.msra.mxu0 0.0
        %594 = vmatprep.subr.mxu0 0.0
        %595 = vmatpush1.xpose.msra.mxu0 0.0
        %596 = vmatprep.subr.mxu0 0.0
        %597 = vmatpush1.xpose.msra.mxu0 0.0
        %598 = vmatprep.mubr.f32.mxu0 0.0
        %599 = vmatmul.mubr.f32.gmra.mrb[0].mxu0 %v348
        %v600 = vpop.f32.mrb[0].mxu0
        %v601 = vadd.f32 %v521, %v600
        %v602 = vpop.f32.mrb[0].mxu0
        %603 = vdwg.mxu0
        %v604 = vld [vmem:[%s3] sm:$0x1]
        %v605 = vld [vmem:[%s4] sm:$0x1]
        %v606 = vsel %vm346, %v429, 0.0
        %607 = vadd.xlane.f32.xlu0 %v606
        %v608 = vpop.xlane.xlu0 %607
        %v609 = vrcp.pop 32.0
        %v610 = vmul.f32 %v608, %v609
        %v611 = vsub.f32 %v429, %v610
        %v612 = vmul.f32 %v611, %v611
        %v613 = vsel %vm346, %v612, 0.0
        %614 = vadd.xlane.f32.xlu0 %v613
        %v615 = vpop.xlane.xlu0 %614
        %v616 = vrcp.pop 31.0
        %v617 = vmul.f32 %v615, %v616
        %v618 = vrsqrt.pop %v617
        %v619 = vmul.f32 %v617, %v618
        %vm620 = vcmp.eq.f32.partialorder %v617, inf
        %v621 = vsel %vm620, %v617, %v619
        %vm622 = vcmp.eq.f32.partialorder %v617, 0.0
        %v623 = vand.u32 %v617, 2147483648
        %v624 = vsel %vm622, %v623, %v621
        %v625 = vadd.f32 %v624, 1e-06
        %v626 = vrcp.pop %v625
        %v627 = vmul.f32 %v611, %v626
        %v629 = vlaneseq
        %v630 = vshrl.u32 %v629, 7
        %v631 = vsub.s32 0, %v630
        %v632 = vrot.slane %v604, %v631
        %v634 = vmul.f32 %v632, %v627
        %v636 = vlaneseq
        %v637 = vshrl.u32 %v636, 7
        %v638 = vsub.s32 0, %v637
        %v639 = vrot.slane %v605, %v638
        %v641 = vadd.f32 %v634, %v639
        %v642 = vmul.f32 %v641, %v641
        %v643 = vld [vmem:[%s5] sm:$0x1]
        %v644 = vld [vmem:[%s6] sm:$0x1]
        %v645 = vsel %vm346, %v515, 0.0
        %646 = vadd.xlane.f32.xlu0 %v645
        %v647 = vpop.xlane.xlu0 %646
        %v648 = vmul.f32 %v647, %v609
        %v649 = vsub.f32 %v515, %v648
        %v650 = vmul.f32 %v649, %v649
        %v651 = vsel %vm346, %v650, 0.0
        %652 = vadd.xlane.f32.xlu0 %v651
        %v653 = vpop.xlane.xlu0 %652
        %v654 = vmul.f32 %v653, %v616
        %v655 = vrsqrt.pop %v654
        %v656 = vmul.f32 %v654, %v655
        %vm657 = vcmp.eq.f32.partialorder %v654, inf
        %v658 = vsel %vm657, %v654, %v656
        %vm659 = vcmp.eq.f32.partialorder %v654, 0.0
        %v660 = vand.u32 %v654, 2147483648
        %v661 = vsel %vm659, %v660, %v658
        %v662 = vadd.f32 %v661, 1e-06
        %v663 = vrcp.pop %v662
        %v664 = vmul.f32 %v649, %v663
        %v666 = vlaneseq
        %v667 = vshrl.u32 %v666, 7
        %v668 = vsub.s32 0, %v667
        %v669 = vrot.slane %v643, %v668
        %v671 = vmul.f32 %v669, %v664
        %v673 = vlaneseq
        %v674 = vshrl.u32 %v673, 7
        %v675 = vsub.s32 0, %v674
        %v676 = vrot.slane %v644, %v675
        %v678 = vadd.f32 %v671, %v676
        %v679 = vmul.f32 %v678, %v678
        %v680 = vlaneseq
        %v681 = vshrl.u32 %v680, 7
        %v682 = vlaneseq
        %v683 = vand.u32 %v682, 127
        %vm684 = vcmp.le.s32.totalorder %v683, %v681
        %vm685 = vcmp.ge.s32.totalorder %v683, 0
        %vm686 = vcmp.lt.s32.totalorder %v683, 8
        %vm687 = vmand %vm685, %vm686
        %v688 = vsel %vm687, 1, 0
        %vm689 = vcmp.eq.s32.totalorder %v688, 1
        %v690 = vsel %vm689, %v642, 0.0
        %v691 = vsel %vm689, %v601, 0.0
        %v693 = vsel %vm346, %v690, 0
        %v696 = vsel %vm346, %v679, 0
        %698 = vmatprep.subr.mxu0 0.0
        %699 = vmatpush1.xpose.msra.mxu0 %v696
        %700 = vmatprep.subr.mxu0 0.0
        %701 = vmatpush1.xpose.msra.mxu0 0.0
        %702 = vmatprep.subr.mxu0 0.0
        %703 = vmatpush1.xpose.msra.mxu0 0.0
        %704 = vmatprep.subr.mxu0 0.0
        %705 = vmatpush1.xpose.msra.mxu0 0.0
        %706 = vmatprep.subr.mxu0 0.0
        %707 = vmatpush1.xpose.msra.mxu0 0.0
        %708 = vmatprep.subr.mxu0 0.0
        %709 = vmatpush1.xpose.msra.mxu0 0.0
        %710 = vmatprep.subr.mxu0 0.0
        %711 = vmatpush1.xpose.msra.mxu0 0.0
        %712 = vmatprep.subr.mxu0 0.0
        %713 = vmatpush1.xpose.msra.mxu0 0.0
        %714 = vmatprep.subr.mxu0 0.0
        %715 = vmatpush1.xpose.msra.mxu0 0.0
        %716 = vmatprep.subr.mxu0 0.0
        %717 = vmatpush1.xpose.msra.mxu0 0.0
        %718 = vmatprep.subr.mxu0 0.0
        %719 = vmatpush1.xpose.msra.mxu0 0.0
        %720 = vmatprep.subr.mxu0 0.0
        %721 = vmatpush1.xpose.msra.mxu0 0.0
        %722 = vmatprep.subr.mxu0 0.0
        %723 = vmatpush1.xpose.msra.mxu0 0.0
        %724 = vmatprep.subr.mxu0 0.0
        %725 = vmatpush1.xpose.msra.mxu0 0.0
        %726 = vmatprep.subr.mxu0 0.0
        %727 = vmatpush1.xpose.msra.mxu0 0.0
        %728 = vmatprep.subr.mxu0 0.0
        %729 = vmatpush1.xpose.msra.mxu0 0.0
        %730 = vmatprep.subr.mxu0 0.0
        %731 = vmatpush1.xpose.msra.mxu0 0.0
        %732 = vmatprep.subr.mxu0 0.0
        %733 = vmatpush1.xpose.msra.mxu0 0.0
        %734 = vmatprep.subr.mxu0 0.0
        %735 = vmatpush1.xpose.msra.mxu0 0.0
        %736 = vmatprep.subr.mxu0 0.0
        %737 = vmatpush1.xpose.msra.mxu0 0.0
        %738 = vmatprep.subr.mxu0 0.0
        %739 = vmatpush1.xpose.msra.mxu0 0.0
        %740 = vmatprep.subr.mxu0 0.0
        %741 = vmatpush1.xpose.msra.mxu0 0.0
        %742 = vmatprep.subr.mxu0 0.0
        %743 = vmatpush1.xpose.msra.mxu0 0.0
        %744 = vmatprep.subr.mxu0 0.0
        %745 = vmatpush1.xpose.msra.mxu0 0.0
        %746 = vmatprep.subr.mxu0 0.0
        %747 = vmatpush1.xpose.msra.mxu0 0.0
        %748 = vmatprep.subr.mxu0 0.0
        %749 = vmatpush1.xpose.msra.mxu0 0.0
        %750 = vmatprep.subr.mxu0 0.0
        %751 = vmatpush1.xpose.msra.mxu0 0.0
        %752 = vmatprep.subr.mxu0 0.0
        %753 = vmatpush1.xpose.msra.mxu0 0.0
        %754 = vmatprep.subr.mxu0 0.0
        %755 = vmatpush1.xpose.msra.mxu0 0.0
        %756 = vmatprep.subr.mxu0 0.0
        %757 = vmatpush1.xpose.msra.mxu0 0.0
        %758 = vmatprep.subr.mxu0 0.0
        %759 = vmatpush1.xpose.msra.mxu0 0.0
        %760 = vmatprep.subr.mxu0 0.0
        %761 = vmatpush1.xpose.msra.mxu0 0.0
        %762 = vmatprep.mubr.f32.mxu0 0.0
        %763 = vmatmul.mubr.f32.gmra.mrb[0].mxu0 %v693
        %v764 = vpop.f32.mrb[0].mxu0
        %v765 = vadd.f32 0.0, %v764
        %v766 = vpop.f32.mrb[0].mxu0
        %767 = vdwg.mxu0
        %v768 = vsel %vm684, %v765, 0.0
        %vm769 = vcmask 64512
        %v770 = vsel %vm769, %v768, 0.0
        %771 = vadd.xlane.f32.xlu0 %v770
        %v772 = vpop.xlane.xlu0 %771
        %v773 = vadd.f32 %v772, 1e-06
        %v774 = vrcp.pop %v773
        %v775 = vmul.f32 1.0, %v774
        %v777 = vsel %vm769, %v768, 0
        %779 = vmatprep.subr.mxu0 0.0
        %780 = vmatpush1.msra.mxu0 %v691
        %781 = vmatprep.subr.mxu0 0.0
        %782 = vmatpush1.msra.mxu0 0.0
        %783 = vmatprep.subr.mxu0 0.0
        %784 = vmatpush1.msra.mxu0 0.0
        %785 = vmatprep.subr.mxu0 0.0
        %786 = vmatpush1.msra.mxu0 0.0
        %787 = vmatprep.subr.mxu0 0.0
        %788 = vmatpush1.msra.mxu0 0.0
        %789 = vmatprep.subr.mxu0 0.0
        %790 = vmatpush1.msra.mxu0 0.0
        %791 = vmatprep.subr.mxu0 0.0
        %792 = vmatpush1.msra.mxu0 0.0
        %793 = vmatprep.subr.mxu0 0.0
        %794 = vmatpush1.msra.mxu0 0.0
        %795 = vmatprep.subr.mxu0 0.0
        %796 = vmatpush1.msra.mxu0 0.0
        %797 = vmatprep.subr.mxu0 0.0
        %798 = vmatpush1.msra.mxu0 0.0
        %799 = vmatprep.subr.mxu0 0.0
        %800 = vmatpush1.msra.mxu0 0.0
        %801 = vmatprep.subr.mxu0 0.0
        %802 = vmatpush1.msra.mxu0 0.0
        %803 = vmatprep.subr.mxu0 0.0
        %804 = vmatpush1.msra.mxu0 0.0
        %805 = vmatprep.subr.mxu0 0.0
        %806 = vmatpush1.msra.mxu0 0.0
        %807 = vmatprep.subr.mxu0 0.0
        %808 = vmatpush1.msra.mxu0 0.0
        %809 = vmatprep.subr.mxu0 0.0
        %810 = vmatpush1.msra.mxu0 0.0
        %811 = vmatprep.subr.mxu0 0.0
        %812 = vmatpush1.msra.mxu0 0.0
        %813 = vmatprep.subr.mxu0 0.0
        %814 = vmatpush1.msra.mxu0 0.0
        %815 = vmatprep.subr.mxu0 0.0
        %816 = vmatpush1.msra.mxu0 0.0
        %817 = vmatprep.subr.mxu0 0.0
        %818 = vmatpush1.msra.mxu0 0.0
        %819 = vmatprep.subr.mxu0 0.0
        %820 = vmatpush1.msra.mxu0 0.0
        %821 = vmatprep.subr.mxu0 0.0
        %822 = vmatpush1.msra.mxu0 0.0
        %823 = vmatprep.subr.mxu0 0.0
        %824 = vmatpush1.msra.mxu0 0.0
        %825 = vmatprep.subr.mxu0 0.0
        %826 = vmatpush1.msra.mxu0 0.0
        %827 = vmatprep.subr.mxu0 0.0
        %828 = vmatpush1.msra.mxu0 0.0
        %829 = vmatprep.subr.mxu0 0.0
        %830 = vmatpush1.msra.mxu0 0.0
        %831 = vmatprep.subr.mxu0 0.0
        %832 = vmatpush1.msra.mxu0 0.0
        %833 = vmatprep.subr.mxu0 0.0
        %834 = vmatpush1.msra.mxu0 0.0
        %835 = vmatprep.subr.mxu0 0.0
        %836 = vmatpush1.msra.mxu0 0.0
        %837 = vmatprep.subr.mxu0 0.0
        %838 = vmatpush1.msra.mxu0 0.0
        %839 = vmatprep.subr.mxu0 0.0
        %840 = vmatpush1.msra.mxu0 0.0
        %841 = vmatprep.subr.mxu0 0.0
        %842 = vmatpush1.msra.mxu0 0.0
        %843 = vmatprep.mubr.f32.mxu0 0.0
        %844 = vmatmul.mubr.f32.gmra.mrb[0].mxu0 %v777
        %v845 = vpop.f32.mrb[0].mxu0
        %v846 = vadd.f32 0.0, %v845
        %v847 = vpop.f32.mrb[0].mxu0
        %848 = vdwg.mxu0
        %v849 = vmul.f32 %v775, %v846
        %v850 = vadd.f32 %v849, 0.0
        %vm851 = vcmp.ge.s32.totalorder %v683, 8
        %vm852 = vcmp.lt.s32.totalorder %v683, 16
        %vm853 = vmand %vm851, %vm852
        %v854 = vsel %vm853, 1, 0
        %vm855 = vcmp.eq.s32.totalorder %v854, 1
        %v856 = vsel %vm855, %v642, 0.0
        %v857 = vsel %vm855, %v601, 0.0
        %v859 = vsel %vm346, %v856, 0
        %861 = vmatprep.subr.mxu0 0.0
        %862 = vmatpush1.xpose.msra.mxu0 %v696
        %863 = vmatprep.subr.mxu0 0.0
        %864 = vmatpush1.xpose.msra.mxu0 0.0
        %865 = vmatprep.subr.mxu0 0.0
        %866 = vmatpush1.xpose.msra.mxu0 0.0
        %867 = vmatprep.subr.mxu0 0.0
        %868 = vmatpush1.xpose.msra.mxu0 0.0
        %869 = vmatprep.subr.mxu0 0.0
        %870 = vmatpush1.xpose.msra.mxu0 0.0
        %871 = vmatprep.subr.mxu0 0.0
        %872 = vmatpush1.xpose.msra.mxu0 0.0
        %873 = vmatprep.subr.mxu0 0.0
        %874 = vmatpush1.xpose.msra.mxu0 0.0
        %875 = vmatprep.subr.mxu0 0.0
        %876 = vmatpush1.xpose.msra.mxu0 0.0
        %877 = vmatprep.subr.mxu0 0.0
        %878 = vmatpush1.xpose.msra.mxu0 0.0
        %879 = vmatprep.subr.mxu0 0.0
        %880 = vmatpush1.xpose.msra.mxu0 0.0
        %881 = vmatprep.subr.mxu0 0.0
        %882 = vmatpush1.xpose.msra.mxu0 0.0
        %883 = vmatprep.subr.mxu0 0.0
        %884 = vmatpush1.xpose.msra.mxu0 0.0
        %885 = vmatprep.subr.mxu0 0.0
        %886 = vmatpush1.xpose.msra.mxu0 0.0
        %887 = vmatprep.subr.mxu0 0.0
        %888 = vmatpush1.xpose.msra.mxu0 0.0
        %889 = vmatprep.subr.mxu0 0.0
        %890 = vmatpush1.xpose.msra.mxu0 0.0
        %891 = vmatprep.subr.mxu0 0.0
        %892 = vmatpush1.xpose.msra.mxu0 0.0
        %893 = vmatprep.subr.mxu0 0.0
        %894 = vmatpush1.xpose.msra.mxu0 0.0
        %895 = vmatprep.subr.mxu0 0.0
        %896 = vmatpush1.xpose.msra.mxu0 0.0
        %897 = vmatprep.subr.mxu0 0.0
        %898 = vmatpush1.xpose.msra.mxu0 0.0
        %899 = vmatprep.subr.mxu0 0.0
        %900 = vmatpush1.xpose.msra.mxu0 0.0
        %901 = vmatprep.subr.mxu0 0.0
        %902 = vmatpush1.xpose.msra.mxu0 0.0
        %903 = vmatprep.subr.mxu0 0.0
        %904 = vmatpush1.xpose.msra.mxu0 0.0
        %905 = vmatprep.subr.mxu0 0.0
        %906 = vmatpush1.xpose.msra.mxu0 0.0
        %907 = vmatprep.subr.mxu0 0.0
        %908 = vmatpush1.xpose.msra.mxu0 0.0
        %909 = vmatprep.subr.mxu0 0.0
        %910 = vmatpush1.xpose.msra.mxu0 0.0
        %911 = vmatprep.subr.mxu0 0.0
        %912 = vmatpush1.xpose.msra.mxu0 0.0
        %913 = vmatprep.subr.mxu0 0.0
        %914 = vmatpush1.xpose.msra.mxu0 0.0
        %915 = vmatprep.subr.mxu0 0.0
        %916 = vmatpush1.xpose.msra.mxu0 0.0
        %917 = vmatprep.subr.mxu0 0.0
        %918 = vmatpush1.xpose.msra.mxu0 0.0
        %919 = vmatprep.subr.mxu0 0.0
        %920 = vmatpush1.xpose.msra.mxu0 0.0
        %921 = vmatprep.subr.mxu0 0.0
        %922 = vmatpush1.xpose.msra.mxu0 0.0
        %923 = vmatprep.subr.mxu0 0.0
        %924 = vmatpush1.xpose.msra.mxu0 0.0
        %925 = vmatprep.mubr.f32.mxu0 0.0
        %926 = vmatmul.mubr.f32.gmra.mrb[0].mxu0 %v859
        %v927 = vpop.f32.mrb[0].mxu0
        %v928 = vadd.f32 0.0, %v927
        %v929 = vpop.f32.mrb[0].mxu0
        %930 = vdwg.mxu0
        %v931 = vsel %vm684, %v928, 0.0
        %v932 = vsel %vm769, %v931, 0.0
        %933 = vadd.xlane.f32.xlu0 %v932
        %v934 = vpop.xlane.xlu0 %933
        %v935 = vadd.f32 %v934, 1e-06
        %v936 = vrcp.pop %v935
        %v937 = vmul.f32 1.0, %v936
        %v939 = vsel %vm769, %v931, 0
        %941 = vmatprep.subr.mxu0 0.0
        %942 = vmatpush1.msra.mxu0 %v857
        %943 = vmatprep.subr.mxu0 0.0
        %944 = vmatpush1.msra.mxu0 0.0
        %945 = vmatprep.subr.mxu0 0.0
        %946 = vmatpush1.msra.mxu0 0.0
        %947 = vmatprep.subr.mxu0 0.0
        %948 = vmatpush1.msra.mxu0 0.0
        %949 = vmatprep.subr.mxu0 0.0
        %950 = vmatpush1.msra.mxu0 0.0
        %951 = vmatprep.subr.mxu0 0.0
        %952 = vmatpush1.msra.mxu0 0.0
        %953 = vmatprep.subr.mxu0 0.0
        %954 = vmatpush1.msra.mxu0 0.0
        %955 = vmatprep.subr.mxu0 0.0
        %956 = vmatpush1.msra.mxu0 0.0
        %957 = vmatprep.subr.mxu0 0.0
        %958 = vmatpush1.msra.mxu0 0.0
        %959 = vmatprep.subr.mxu0 0.0
        %960 = vmatpush1.msra.mxu0 0.0
        %961 = vmatprep.subr.mxu0 0.0
        %962 = vmatpush1.msra.mxu0 0.0
        %963 = vmatprep.subr.mxu0 0.0
        %964 = vmatpush1.msra.mxu0 0.0
        %965 = vmatprep.subr.mxu0 0.0
        %966 = vmatpush1.msra.mxu0 0.0
        %967 = vmatprep.subr.mxu0 0.0
        %968 = vmatpush1.msra.mxu0 0.0
        %969 = vmatprep.subr.mxu0 0.0
        %970 = vmatpush1.msra.mxu0 0.0
        %971 = vmatprep.subr.mxu0 0.0
        %972 = vmatpush1.msra.mxu0 0.0
        %973 = vmatprep.subr.mxu0 0.0
        %974 = vmatpush1.msra.mxu0 0.0
        %975 = vmatprep.subr.mxu0 0.0
        %976 = vmatpush1.msra.mxu0 0.0
        %977 = vmatprep.subr.mxu0 0.0
        %978 = vmatpush1.msra.mxu0 0.0
        %979 = vmatprep.subr.mxu0 0.0
        %980 = vmatpush1.msra.mxu0 0.0
        %981 = vmatprep.subr.mxu0 0.0
        %982 = vmatpush1.msra.mxu0 0.0
        %983 = vmatprep.subr.mxu0 0.0
        %984 = vmatpush1.msra.mxu0 0.0
        %985 = vmatprep.subr.mxu0 0.0
        %986 = vmatpush1.msra.mxu0 0.0
        %987 = vmatprep.subr.mxu0 0.0
        %988 = vmatpush1.msra.mxu0 0.0
        %989 = vmatprep.subr.mxu0 0.0
        %990 = vmatpush1.msra.mxu0 0.0
        %991 = vmatprep.subr.mxu0 0.0
        %992 = vmatpush1.msra.mxu0 0.0
        %993 = vmatprep.subr.mxu0 0.0
        %994 = vmatpush1.msra.mxu0 0.0
        %995 = vmatprep.subr.mxu0 0.0
        %996 = vmatpush1.msra.mxu0 0.0
        %997 = vmatprep.subr.mxu0 0.0
        %998 = vmatpush1.msra.mxu0 0.0
        %999 = vmatprep.subr.mxu0 0.0
        %1000 = vmatpush1.msra.mxu0 0.0
        %1001 = vmatprep.subr.mxu0 0.0
        %1002 = vmatpush1.msra.mxu0 0.0
        %1003 = vmatprep.subr.mxu0 0.0
        %1004 = vmatpush1.msra.mxu0 0.0
        %1005 = vmatprep.mubr.f32.mxu0 0.0
        %1006 = vmatmul.mubr.f32.gmra.mrb[0].mxu0 %v939
        %v1007 = vpop.f32.mrb[0].mxu0
        %v1008 = vadd.f32 0.0, %v1007
        %v1009 = vpop.f32.mrb[0].mxu0
        %1010 = vdwg.mxu0
        %v1011 = vmul.f32 %v937, %v1008
        %v1012 = vadd.f32 %v850, %v1011
        %vm1013 = vcmp.ge.s32.totalorder %v683, 16
        %vm1014 = vcmp.lt.s32.totalorder %v683, 24
        %vm1015 = vmand %vm1013, %vm1014
        %v1016 = vsel %vm1015, 1, 0
        %vm1017 = vcmp.eq.s32.totalorder %v1016, 1
        %v1018 = vsel %vm1017, %v642, 0.0
        %v1019 = vsel %vm1017, %v601, 0.0
        %v1021 = vsel %vm346, %v1018, 0
        %1023 = vmatprep.subr.mxu0 0.0
        %1024 = vmatpush1.xpose.msra.mxu0 %v696
        %1025 = vmatprep.subr.mxu0 0.0
        %1026 = vmatpush1.xpose.msra.mxu0 0.0
        %1027 = vmatprep.subr.mxu0 0.0
        %1028 = vmatpush1.xpose.msra.mxu0 0.0
        %1029 = vmatprep.subr.mxu0 0.0
        %1030 = vmatpush1.xpose.msra.mxu0 0.0
        %1031 = vmatprep.subr.mxu0 0.0
        %1032 = vmatpush1.xpose.msra.mxu0 0.0
        %1033 = vmatprep.subr.mxu0 0.0
        %1034 = vmatpush1.xpose.msra.mxu0 0.0
        %1035 = vmatprep.subr.mxu0 0.0
        %1036 = vmatpush1.xpose.msra.mxu0 0.0
        %1037 = vmatprep.subr.mxu0 0.0
        %1038 = vmatpush1.xpose.msra.mxu0 0.0
        %1039 = vmatprep.subr.mxu0 0.0
        %1040 = vmatpush1.xpose.msra.mxu0 0.0
        %1041 = vmatprep.subr.mxu0 0.0
        %1042 = vmatpush1.xpose.msra.mxu0 0.0
        %1043 = vmatprep.subr.mxu0 0.0
        %1044 = vmatpush1.xpose.msra.mxu0 0.0
        %1045 = vmatprep.subr.mxu0 0.0
        %1046 = vmatpush1.xpose.msra.mxu0 0.0
        %1047 = vmatprep.subr.mxu0 0.0
        %1048 = vmatpush1.xpose.msra.mxu0 0.0
        %1049 = vmatprep.subr.mxu0 0.0
        %1050 = vmatpush1.xpose.msra.mxu0 0.0
        %1051 = vmatprep.subr.mxu0 0.0
        %1052 = vmatpush1.xpose.msra.mxu0 0.0
        %1053 = vmatprep.subr.mxu0 0.0
        %1054 = vmatpush1.xpose.msra.mxu0 0.0
        %1055 = vmatprep.subr.mxu0 0.0
        %1056 = vmatpush1.xpose.msra.mxu0 0.0
        %1057 = vmatprep.subr.mxu0 0.0
        %1058 = vmatpush1.xpose.msra.mxu0 0.0
        %1059 = vmatprep.subr.mxu0 0.0
        %1060 = vmatpush1.xpose.msra.mxu0 0.0
        %1061 = vmatprep.subr.mxu0 0.0
        %1062 = vmatpush1.xpose.msra.mxu0 0.0
        %1063 = vmatprep.subr.mxu0 0.0
        %1064 = vmatpush1.xpose.msra.mxu0 0.0
        %1065 = vmatprep.subr.mxu0 0.0
        %1066 = vmatpush1.xpose.msra.mxu0 0.0
        %1067 = vmatprep.subr.mxu0 0.0
        %1068 = vmatpush1.xpose.msra.mxu0 0.0
        %1069 = vmatprep.subr.mxu0 0.0
        %1070 = vmatpush1.xpose.msra.mxu0 0.0
        %1071 = vmatprep.subr.mxu0 0.0
        %1072 = vmatpush1.xpose.msra.mxu0 0.0
        %1073 = vmatprep.subr.mxu0 0.0
        %1074 = vmatpush1.xpose.msra.mxu0 0.0
        %1075 = vmatprep.subr.mxu0 0.0
        %1076 = vmatpush1.xpose.msra.mxu0 0.0
        %1077 = vmatprep.subr.mxu0 0.0
        %1078 = vmatpush1.xpose.msra.mxu0 0.0
        %1079 = vmatprep.subr.mxu0 0.0
        %1080 = vmatpush1.xpose.msra.mxu0 0.0
        %1081 = vmatprep.subr.mxu0 0.0
        %1082 = vmatpush1.xpose.msra.mxu0 0.0
        %1083 = vmatprep.subr.mxu0 0.0
        %1084 = vmatpush1.xpose.msra.mxu0 0.0
        %1085 = vmatprep.subr.mxu0 0.0
        %1086 = vmatpush1.xpose.msra.mxu0 0.0
        %1087 = vmatprep.mubr.f32.mxu0 0.0
        %1088 = vmatmul.mubr.f32.gmra.mrb[0].mxu0 %v1021
        %v1089 = vpop.f32.mrb[0].mxu0
        %v1090 = vadd.f32 0.0, %v1089
        %v1091 = vpop.f32.mrb[0].mxu0
        %1092 = vdwg.mxu0
        %v1093 = vsel %vm684, %v1090, 0.0
        %v1094 = vsel %vm769, %v1093, 0.0
        %1095 = vadd.xlane.f32.xlu0 %v1094
        %v1096 = vpop.xlane.xlu0 %1095
        %v1097 = vadd.f32 %v1096, 1e-06
        %v1098 = vrcp.pop %v1097
        %v1099 = vmul.f32 1.0, %v1098
        %v1101 = vsel %vm769, %v1093, 0
        %1103 = vmatprep.subr.mxu0 0.0
        %1104 = vmatpush1.msra.mxu0 %v1019
        %1105 = vmatprep.subr.mxu0 0.0
        %1106 = vmatpush1.msra.mxu0 0.0
        %1107 = vmatprep.subr.mxu0 0.0
        %1108 = vmatpush1.msra.mxu0 0.0
        %1109 = vmatprep.subr.mxu0 0.0
        %1110 = vmatpush1.msra.mxu0 0.0
        %1111 = vmatprep.subr.mxu0 0.0
        %1112 = vmatpush1.msra.mxu0 0.0
        %1113 = vmatprep.subr.mxu0 0.0
        %1114 = vmatpush1.msra.mxu0 0.0
        %1115 = vmatprep.subr.mxu0 0.0
        %1116 = vmatpush1.msra.mxu0 0.0
        %1117 = vmatprep.subr.mxu0 0.0
        %1118 = vmatpush1.msra.mxu0 0.0
        %1119 = vmatprep.subr.mxu0 0.0
        %1120 = vmatpush1.msra.mxu0 0.0
        %1121 = vmatprep.subr.mxu0 0.0
        %1122 = vmatpush1.msra.mxu0 0.0
        %1123 = vmatprep.subr.mxu0 0.0
        %1124 = vmatpush1.msra.mxu0 0.0
        %1125 = vmatprep.subr.mxu0 0.0
        %1126 = vmatpush1.msra.mxu0 0.0
        %1127 = vmatprep.subr.mxu0 0.0
        %1128 = vmatpush1.msra.mxu0 0.0
        %1129 = vmatprep.subr.mxu0 0.0
        %1130 = vmatpush1.msra.mxu0 0.0
        %1131 = vmatprep.subr.mxu0 0.0
        %1132 = vmatpush1.msra.mxu0 0.0
        %1133 = vmatprep.subr.mxu0 0.0
        %1134 = vmatpush1.msra.mxu0 0.0
        %1135 = vmatprep.subr.mxu0 0.0
        %1136 = vmatpush1.msra.mxu0 0.0
        %1137 = vmatprep.subr.mxu0 0.0
        %1138 = vmatpush1.msra.mxu0 0.0
        %1139 = vmatprep.subr.mxu0 0.0
        %1140 = vmatpush1.msra.mxu0 0.0
        %1141 = vmatprep.subr.mxu0 0.0
        %1142 = vmatpush1.msra.mxu0 0.0
        %1143 = vmatprep.subr.mxu0 0.0
        %1144 = vmatpush1.msra.mxu0 0.0
        %1145 = vmatprep.subr.mxu0 0.0
        %1146 = vmatpush1.msra.mxu0 0.0
        %1147 = vmatprep.subr.mxu0 0.0
        %1148 = vmatpush1.msra.mxu0 0.0
        %1149 = vmatprep.subr.mxu0 0.0
        %1150 = vmatpush1.msra.mxu0 0.0
        %1151 = vmatprep.subr.mxu0 0.0
        %1152 = vmatpush1.msra.mxu0 0.0
        %1153 = vmatprep.subr.mxu0 0.0
        %1154 = vmatpush1.msra.mxu0 0.0
        %1155 = vmatprep.subr.mxu0 0.0
        %1156 = vmatpush1.msra.mxu0 0.0
        %1157 = vmatprep.subr.mxu0 0.0
        %1158 = vmatpush1.msra.mxu0 0.0
        %1159 = vmatprep.subr.mxu0 0.0
        %1160 = vmatpush1.msra.mxu0 0.0
        %1161 = vmatprep.subr.mxu0 0.0
        %1162 = vmatpush1.msra.mxu0 0.0
        %1163 = vmatprep.subr.mxu0 0.0
        %1164 = vmatpush1.msra.mxu0 0.0
        %1165 = vmatprep.subr.mxu0 0.0
        %1166 = vmatpush1.msra.mxu0 0.0
        %1167 = vmatprep.mubr.f32.mxu0 0.0
        %1168 = vmatmul.mubr.f32.gmra.mrb[0].mxu0 %v1101
        %v1169 = vpop.f32.mrb[0].mxu0
        %v1170 = vadd.f32 0.0, %v1169
        %v1171 = vpop.f32.mrb[0].mxu0
        %1172 = vdwg.mxu0
        %v1173 = vmul.f32 %v1099, %v1170
        %v1174 = vadd.f32 %v1012, %v1173
        %vm1175 = vcmp.ge.s32.totalorder %v683, 24
        %vm1176 = vcmp.lt.s32.totalorder %v683, 32
        %vm1177 = vmand %vm1175, %vm1176
        %v1178 = vsel %vm1177, 1, 0
        %vm1179 = vcmp.eq.s32.totalorder %v1178, 1
        %v1180 = vsel %vm1179, %v642, 0.0
        %v1181 = vsel %vm1179, %v601, 0.0
        %v1183 = vsel %vm346, %v1180, 0
        %1185 = vmatprep.subr.mxu0 0.0
        %1186 = vmatpush1.xpose.msra.mxu0 %v696
        %1187 = vmatprep.subr.mxu0 0.0
        %1188 = vmatpush1.xpose.msra.mxu0 0.0
        %1189 = vmatprep.subr.mxu0 0.0
        %1190 = vmatpush1.xpose.msra.mxu0 0.0
        %1191 = vmatprep.subr.mxu0 0.0
        %1192 = vmatpush1.xpose.msra.mxu0 0.0
        %1193 = vmatprep.subr.mxu0 0.0
        %1194 = vmatpush1.xpose.msra.mxu0 0.0
        %1195 = vmatprep.subr.mxu0 0.0
        %1196 = vmatpush1.xpose.msra.mxu0 0.0
        %1197 = vmatprep.subr.mxu0 0.0
        %1198 = vmatpush1.xpose.msra.mxu0 0.0
        %1199 = vmatprep.subr.mxu0 0.0
        %1200 = vmatpush1.xpose.msra.mxu0 0.0
        %1201 = vmatprep.subr.mxu0 0.0
        %1202 = vmatpush1.xpose.msra.mxu0 0.0
        %1203 = vmatprep.subr.mxu0 0.0
        %1204 = vmatpush1.xpose.msra.mxu0 0.0
        %1205 = vmatprep.subr.mxu0 0.0
        %1206 = vmatpush1.xpose.msra.mxu0 0.0
        %1207 = vmatprep.subr.mxu0 0.0
        %1208 = vmatpush1.xpose.msra.mxu0 0.0
        %1209 = vmatprep.subr.mxu0 0.0
        %1210 = vmatpush1.xpose.msra.mxu0 0.0
        %1211 = vmatprep.subr.mxu0 0.0
        %1212 = vmatpush1.xpose.msra.mxu0 0.0
        %1213 = vmatprep.subr.mxu0 0.0
        %1214 = vmatpush1.xpose.msra.mxu0 0.0
        %1215 = vmatprep.subr.mxu0 0.0
        %1216 = vmatpush1.xpose.msra.mxu0 0.0
        %1217 = vmatprep.subr.mxu0 0.0
        %1218 = vmatpush1.xpose.msra.mxu0 0.0
        %1219 = vmatprep.subr.mxu0 0.0
        %1220 = vmatpush1.xpose.msra.mxu0 0.0
        %1221 = vmatprep.subr.mxu0 0.0
        %1222 = vmatpush1.xpose.msra.mxu0 0.0
        %1223 = vmatprep.subr.mxu0 0.0
        %1224 = vmatpush1.xpose.msra.mxu0 0.0
        %1225 = vmatprep.subr.mxu0 0.0
        %1226 = vmatpush1.xpose.msra.mxu0 0.0
        %1227 = vmatprep.subr.mxu0 0.0
        %1228 = vmatpush1.xpose.msra.mxu0 0.0
        %1229 = vmatprep.subr.mxu0 0.0
        %1230 = vmatpush1.xpose.msra.mxu0 0.0
        %1231 = vmatprep.subr.mxu0 0.0
        %1232 = vmatpush1.xpose.msra.mxu0 0.0
        %1233 = vmatprep.subr.mxu0 0.0
        %1234 = vmatpush1.xpose.msra.mxu0 0.0
        %1235 = vmatprep.subr.mxu0 0.0
        %1236 = vmatpush1.xpose.msra.mxu0 0.0
        %1237 = vmatprep.subr.mxu0 0.0
        %1238 = vmatpush1.xpose.msra.mxu0 0.0
        %1239 = vmatprep.subr.mxu0 0.0
        %1240 = vmatpush1.xpose.msra.mxu0 0.0
        %1241 = vmatprep.subr.mxu0 0.0
        %1242 = vmatpush1.xpose.msra.mxu0 0.0
        %1243 = vmatprep.subr.mxu0 0.0
        %1244 = vmatpush1.xpose.msra.mxu0 0.0
        %1245 = vmatprep.subr.mxu0 0.0
        %1246 = vmatpush1.xpose.msra.mxu0 0.0
        %1247 = vmatprep.subr.mxu0 0.0
        %1248 = vmatpush1.xpose.msra.mxu0 0.0
        %1249 = vmatprep.mubr.f32.mxu0 0.0
        %1250 = vmatmul.mubr.f32.gmra.mrb[0].mxu0 %v1183
        %v1251 = vpop.f32.mrb[0].mxu0
        %v1252 = vadd.f32 0.0, %v1251
        %v1253 = vpop.f32.mrb[0].mxu0
        %1254 = vdwg.mxu0
        %v1255 = vsel %vm684, %v1252, 0.0
        %v1256 = vsel %vm769, %v1255, 0.0
        %1257 = vadd.xlane.f32.xlu0 %v1256
        %v1258 = vpop.xlane.xlu0 %1257
        %v1259 = vadd.f32 %v1258, 1e-06
        %v1260 = vrcp.pop %v1259
        %v1261 = vmul.f32 1.0, %v1260
        %v1263 = vsel %vm769, %v1255, 0
        %1265 = vmatprep.subr.mxu0 0.0
        %1266 = vmatpush1.msra.mxu0 %v1181
        %1267 = vmatprep.subr.mxu0 0.0
        %1268 = vmatpush1.msra.mxu0 0.0
        %1269 = vmatprep.subr.mxu0 0.0
        %1270 = vmatpush1.msra.mxu0 0.0
        %1271 = vmatprep.subr.mxu0 0.0
        %1272 = vmatpush1.msra.mxu0 0.0
        %1273 = vmatprep.subr.mxu0 0.0
        %1274 = vmatpush1.msra.mxu0 0.0
        %1275 = vmatprep.subr.mxu0 0.0
        %1276 = vmatpush1.msra.mxu0 0.0
        %1277 = vmatprep.subr.mxu0 0.0
        %1278 = vmatpush1.msra.mxu0 0.0
        %1279 = vmatprep.subr.mxu0 0.0
        %1280 = vmatpush1.msra.mxu0 0.0
        %1281 = vmatprep.subr.mxu0 0.0
        %1282 = vmatpush1.msra.mxu0 0.0
        %1283 = vmatprep.subr.mxu0 0.0
        %1284 = vmatpush1.msra.mxu0 0.0
        %1285 = vmatprep.subr.mxu0 0.0
        %1286 = vmatpush1.msra.mxu0 0.0
        %1287 = vmatprep.subr.mxu0 0.0
        %1288 = vmatpush1.msra.mxu0 0.0
        %1289 = vmatprep.subr.mxu0 0.0
        %1290 = vmatpush1.msra.mxu0 0.0
        %1291 = vmatprep.subr.mxu0 0.0
        %1292 = vmatpush1.msra.mxu0 0.0
        %1293 = vmatprep.subr.mxu0 0.0
        %1294 = vmatpush1.msra.mxu0 0.0
        %1295 = vmatprep.subr.mxu0 0.0
        %1296 = vmatpush1.msra.mxu0 0.0
        %1297 = vmatprep.subr.mxu0 0.0
        %1298 = vmatpush1.msra.mxu0 0.0
        %1299 = vmatprep.subr.mxu0 0.0
        %1300 = vmatpush1.msra.mxu0 0.0
        %1301 = vmatprep.subr.mxu0 0.0
        %1302 = vmatpush1.msra.mxu0 0.0
        %1303 = vmatprep.subr.mxu0 0.0
        %1304 = vmatpush1.msra.mxu0 0.0
        %1305 = vmatprep.subr.mxu0 0.0
        %1306 = vmatpush1.msra.mxu0 0.0
        %1307 = vmatprep.subr.mxu0 0.0
        %1308 = vmatpush1.msra.mxu0 0.0
        %1309 = vmatprep.subr.mxu0 0.0
        %1310 = vmatpush1.msra.mxu0 0.0
        %1311 = vmatprep.subr.mxu0 0.0
        %1312 = vmatpush1.msra.mxu0 0.0
        %1313 = vmatprep.subr.mxu0 0.0
        %1314 = vmatpush1.msra.mxu0 0.0
        %1315 = vmatprep.subr.mxu0 0.0
        %1316 = vmatpush1.msra.mxu0 0.0
        %1317 = vmatprep.subr.mxu0 0.0
        %1318 = vmatpush1.msra.mxu0 0.0
        %1319 = vmatprep.subr.mxu0 0.0
        %1320 = vmatpush1.msra.mxu0 0.0
        %1321 = vmatprep.subr.mxu0 0.0
        %1322 = vmatpush1.msra.mxu0 0.0
        %1323 = vmatprep.subr.mxu0 0.0
        %1324 = vmatpush1.msra.mxu0 0.0
        %1325 = vmatprep.subr.mxu0 0.0
        %1326 = vmatpush1.msra.mxu0 0.0
        %1327 = vmatprep.subr.mxu0 0.0
        %1328 = vmatpush1.msra.mxu0 0.0
        %1329 = vmatprep.mubr.f32.mxu0 0.0
        %1330 = vmatmul.mubr.f32.gmra.mrb[0].mxu0 %v1263
        %v1331 = vpop.f32.mrb[0].mxu0
        %v1332 = vadd.f32 0.0, %v1331
        %v1333 = vpop.f32.mrb[0].mxu0
        %1334 = vdwg.mxu0
        %v1335 = vmul.f32 %v1261, %v1332
        %v1336 = vadd.f32 %v1174, %v1335
        %v1337 = vld [vmem:[%s7] sm:$0xff]
        %v1338 = vld [vmem:[%s7 + $0x8] sm:$0xff]
        %v1339 = vld [vmem:[%s7 + $0x10] sm:$0xff]
        %v1340 = vld [vmem:[%s7 + $0x18] sm:$0xff]
        %v1341 = vld [vmem:[%s8] sm:$0x1]
        %v1343 = vlaneseq
        %v1344 = vshrl.u32 %v1343, 7
        %v1345 = vsub.s32 0, %v1344
        %v1346 = vrot.slane %v1341, %v1345
        %v1349 = vsel %vm346, %v1336, 0
        %v1352 = vsel %vm346, %v1337, 0
        %v1355 = vsel %vm346, %v1338, 0
        %v1358 = vsel %vm346, %v1339, 0
        %v1361 = vsel %vm346, %v1340, 0
        %1363 = vmatprep.subr.mxu0 0.0
        %1364 = vmatpush1.xpose.msra.mxu0 %v1352
        %1365 = vmatprep.subr.mxu0 0.0
        %1366 = vmatpush1.xpose.msra.mxu0 %v1355
        %1367 = vmatprep.subr.mxu0 0.0
        %1368 = vmatpush1.xpose.msra.mxu0 %v1358
        %1369 = vmatprep.subr.mxu0 0.0
        %1370 = vmatpush1.xpose.msra.mxu0 %v1361
        %1371 = vmatprep.subr.mxu0 0.0
        %1372 = vmatpush1.xpose.msra.mxu0 0.0
        %1373 = vmatprep.subr.mxu0 0.0
        %1374 = vmatpush1.xpose.msra.mxu0 0.0
        %1375 = vmatprep.subr.mxu0 0.0
        %1376 = vmatpush1.xpose.msra.mxu0 0.0
        %1377 = vmatprep.subr.mxu0 0.0
        %1378 = vmatpush1.xpose.msra.mxu0 0.0
        %1379 = vmatprep.subr.mxu0 0.0
        %1380 = vmatpush1.xpose.msra.mxu0 0.0
        %1381 = vmatprep.subr.mxu0 0.0
        %1382 = vmatpush1.xpose.msra.mxu0 0.0
        %1383 = vmatprep.subr.mxu0 0.0
        %1384 = vmatpush1.xpose.msra.mxu0 0.0
        %1385 = vmatprep.subr.mxu0 0.0
        %1386 = vmatpush1.xpose.msra.mxu0 0.0
        %1387 = vmatprep.subr.mxu0 0.0
        %1388 = vmatpush1.xpose.msra.mxu0 0.0
        %1389 = vmatprep.subr.mxu0 0.0
        %1390 = vmatpush1.xpose.msra.mxu0 0.0
        %1391 = vmatprep.subr.mxu0 0.0
        %1392 = vmatpush1.xpose.msra.mxu0 0.0
        %1393 = vmatprep.subr.mxu0 0.0
        %1394 = vmatpush1.xpose.msra.mxu0 0.0
        %1395 = vmatprep.subr.mxu0 0.0
        %1396 = vmatpush1.xpose.msra.mxu0 0.0
        %1397 = vmatprep.subr.mxu0 0.0
        %1398 = vmatpush1.xpose.msra.mxu0 0.0
        %1399 = vmatprep.subr.mxu0 0.0
        %1400 = vmatpush1.xpose.msra.mxu0 0.0
        %1401 = vmatprep.subr.mxu0 0.0
        %1402 = vmatpush1.xpose.msra.mxu0 0.0
        %1403 = vmatprep.subr.mxu0 0.0
        %1404 = vmatpush1.xpose.msra.mxu0 0.0
        %1405 = vmatprep.subr.mxu0 0.0
        %1406 = vmatpush1.xpose.msra.mxu0 0.0
        %1407 = vmatprep.subr.mxu0 0.0
        %1408 = vmatpush1.xpose.msra.mxu0 0.0
        %1409 = vmatprep.subr.mxu0 0.0
        %1410 = vmatpush1.xpose.msra.mxu0 0.0
        %1411 = vmatprep.subr.mxu0 0.0
        %1412 = vmatpush1.xpose.msra.mxu0 0.0
        %1413 = vmatprep.subr.mxu0 0.0
        %1414 = vmatpush1.xpose.msra.mxu0 0.0
        %1415 = vmatprep.subr.mxu0 0.0
        %1416 = vmatpush1.xpose.msra.mxu0 0.0
        %1417 = vmatprep.subr.mxu0 0.0
        %1418 = vmatpush1.xpose.msra.mxu0 0.0
        %1419 = vmatprep.subr.mxu0 0.0
        %1420 = vmatpush1.xpose.msra.mxu0 0.0
        %1421 = vmatprep.subr.mxu0 0.0
        %1422 = vmatpush1.xpose.msra.mxu0 0.0
        %1423 = vmatprep.subr.mxu0 0.0
        %1424 = vmatpush1.xpose.msra.mxu0 0.0
        %1425 = vmatprep.subr.mxu0 0.0
        %1426 = vmatpush1.xpose.msra.mxu0 0.0
        %1427 = vmatprep.mubr.f32.mxu0 0.0
        %1428 = vmatmul.mubr.f32.gmra.mrb[0].mxu0 %v1349
        %v1429 = vpop.f32.mrb[0].mxu0
        %v1430 = vadd.f32 %v1346, %v1429
        %v1431 = vpop.f32.mrb[0].mxu0
        %1432 = vdwg.mxu0
        %1433 = vst.msk [vmem:[%s323] sm:$0xff] %vm346, %v1430
        %s1434 = sand.u32 %s225, 1
        %s1435 = scalar_lea.sflag [#allocation3], %s1434
        %s1436 = sand.u32 %s225, 1
        %s1437 = smul.addr %s1436, 8
        %s1438 = scalar_lea.vmem [#allocation2], %s1437
        // Predicated region
        $region57: #{rebased_attention.1} parent=55 // pred_check
          %p1439 = pneg %p235
        $region58: #{rebased_attention.1} parent=55 // pred_check_branch
          %1441 = sbr.rel (%p1439) target = $region60
        $region59: #{rebased_attention.1} parent=55 // pred_region
          %s1443 = ssub.s32 128, 128
          %1444 = vsyncadd %s1435, %s1443
          %s1445 = smul.addr %s23, 128
          %s1446 = scalar_lea.hbm %s9, %s1445
          %s1448 = sshll.u32 %s1438, 4
          %s1449 = int_to_ptr.vmem [resolvable:$true] %s1448
          %1451 = dma.vmem_to_hbm [thread:$0]  %s1449, 128, %s1446, %s1435
        $region60: #{rebased_attention.1} parent=55 // pred_fallthru
          _
      $region56: #{rebased_attention.1} parent=5 // pred_fallthru
        _
      %p1452 = scmp.le.s32.totalorder 2, %s18
      // Predicated region
      $region61: #{rebased_attention.1} parent=5 // pred_check
        %p1453 = pneg %p1452
      $region62: #{rebased_attention.1} parent=5 // pred_check_branch
        %1455 = sbr.rel (%p1453) target = $region64
      $region63: #{rebased_attention.1} parent=5 // pred_region
        %s1456 = ssub.s32 %s18, 2
        // Predicated region
        $region65: #{rebased_attention.1} parent=63 // pred_check
          %p1457 = pneg %p241
        $region66: #{rebased_attention.1} parent=63 // pred_check_branch
          %1459 = sbr.rel (%p1457) target = $region68
        $region67: #{rebased_attention.1} parent=63 // pred_region
          %s1460 = sand.u32 %s226, 1
          %s1461 = scalar_lea.sflag [#allocation3], %s1460
          %s1462 = sand.u32 %s226, 1
          %s1463 = smul.addr %s1462, 8
          %s1464 = scalar_lea.vmem [#allocation2], %s1463
          %1465 = dma.done %s1461, 128
        $region68: #{rebased_attention.1} parent=63 // pred_fallthru
          _
      $region64: #{rebased_attention.1} parent=5 // pred_fallthru
        _
    $region6: #{rebased_attention.1} parent=1 // loop_footer
      %s22 = sadd.s32 1, %s18
    $region7: #{rebased_attention.1} parent=1 // loop_footer_branch
      %17 = sbr.rel target = $region3
    $region8: #{rebased_attention.1} parent=1 // loop_exit
      _
    %1466 = vsyncpa [#allocation3], 1
    %s1467 = scalar_lea.sflag [#allocation3], 1
    %1468 = vsyncpa %s1467, 1

</llo_original>
